<compile_context>
chip_gen: v7x
topology: tpu7x:2x2x1
jax: 0.10.0
libtpu: 0.0.40
codegen_flags: <defaults>
</compile_context>

<pallas_src>
import numpy as np
import jax
import jax.numpy as jnp
from jax.experimental import pallas as pl
from jax.experimental.pallas import tpu as pltpu

IN_DIM = 896
HIDDEN = 64
HIDDEN_PAD = 128      # zero-padded hidden width (full 128-lane vreg)
OUT_DIM = 640         # 5 * 128 -> lane-dense unmasked stores
MAX_TILE_M = 2048     # double-buffered footprint ~26 MiB @ f32 x -> fits v7x VMEM


# ---------------------------------------------------------------------------
# Pallas kernel: fused Linear(896,64) -> ReLU -> Linear(64,640)
# ---------------------------------------------------------------------------
def _student_kernel(x_ref, w1_ref, b1_ref, w2_ref, b2_ref, o_ref):
    # x: (TILE_M, 896) f32 (cast to bf16 here, free VPU work under DMA slack)
    # w1: (896, 128) bf16; w2: (128, 640) bf16; biases f32; output f32.
    x = x_ref[...].astype(jnp.bfloat16)
    h = jnp.dot(x, w1_ref[...], preferred_element_type=jnp.float32)
    h = jnp.maximum(h + b1_ref[...], 0.0)                 # f32 epilogue
    o = jnp.dot(h.astype(jnp.bfloat16), w2_ref[...],
                preferred_element_type=jnp.float32)
    o_ref[...] = o + b2_ref[...]


def _round_up(n, m):
    return (n + m - 1) // m * m


def _pick_tile_m(m):
    """Row-tile size: (8,128)-aligned, >=2 grid steps for medium/large m."""
    if m >= 256:
        # split into at least 2 steps so v7x's second TensorCore gets work
        tile = _round_up(-(-m // 2), 128)
    else:
        tile = _round_up(max(m, 1), 128)
    return min(MAX_TILE_M, tile)


# ---------------------------------------------------------------------------
# Wrapper: row-tiled pallas_call (no pad / cast / slice on the HBM side)
# ---------------------------------------------------------------------------
def student_nn_forward(params, x):
    """Forward of Student_NN for x of shape (..., 896) -> (..., 640)."""
    lead = x.shape[:-1]
    m = 1
    for d in lead:
        m *= int(d)

    x2 = x.reshape(m, IN_DIM)                  # metadata-only reshape
    tile_m = _pick_tile_m(m)
    grid = (pl.cdiv(m, tile_m),)               # ragged last block masked by Pallas

    out = pl.pallas_call(
        _student_kernel,
        out_shape=jax.ShapeDtypeStruct((m, OUT_DIM), jnp.float32),
        grid=grid,
        in_specs=[
            pl.BlockSpec((tile_m, IN_DIM), lambda i: (i, 0)),        # x row tile
            pl.BlockSpec((IN_DIM, HIDDEN_PAD), lambda i: (0, 0)),    # w1 (resident)
            pl.BlockSpec((1, HIDDEN_PAD), lambda i: (0, 0)),         # b1 (resident)
            pl.BlockSpec((HIDDEN_PAD, OUT_DIM), lambda i: (0, 0)),   # w2 (resident)
            pl.BlockSpec((1, OUT_DIM), lambda i: (0, 0)),            # b2 (resident)
        ],
        out_specs=pl.BlockSpec((tile_m, OUT_DIM), lambda i: (i, 0)),
        compiler_params=pltpu.CompilerParams(
            dimension_semantics=("parallel",),
            vmem_limit_bytes=48 * 1024 * 1024,
        ),
    )(x2, params["w1"], params["b1"], params["w2"], params["b2"])

    return out.reshape(*lead, OUT_DIM)


# ---------------------------------------------------------------------------
# Parameters (deterministic nn.Linear-style uniform init), pre-padded/pre-cast
# ---------------------------------------------------------------------------
def init_params(key):
    k1w, k1b, k2w, k2b = jax.random.split(key, 4)
    bound1 = 1.0 / np.sqrt(IN_DIM)
    w1 = jax.random.uniform(k1w, (IN_DIM, HIDDEN), jnp.float32, -bound1, bound1)
    b1 = jax.random.uniform(k1b, (HIDDEN,), jnp.float32, -bound1, bound1)
    bound2 = 1.0 / np.sqrt(HIDDEN)
    w2 = jax.random.uniform(k2w, (HIDDEN, OUT_DIM), jnp.float32, -bound2, bound2)
    b2 = jax.random.uniform(k2b, (OUT_DIM,), jnp.float32, -bound2, bound2)

    # Zero-pad hidden 64 -> 128 and pre-cast matmul operands to bf16 once.
    # Padded w1 columns / b1 entries are zero -> ReLU(0)=0; padded w2 rows are
    # zero -> numerically identical to the 64-wide MLP.
    w1p = jnp.zeros((IN_DIM, HIDDEN_PAD), jnp.float32).at[:, :HIDDEN].set(w1)
    b1p = jnp.zeros((1, HIDDEN_PAD), jnp.float32).at[:, :HIDDEN].set(b1)
    w2p = jnp.zeros((HIDDEN_PAD, OUT_DIM), jnp.float32).at[:HIDDEN, :].set(w2)

    return {
        "w1": w1p.astype(jnp.bfloat16),
        "b1": b1p,
        "w2": w2p.astype(jnp.bfloat16),
        "b2": b2.reshape(1, OUT_DIM),
        # un-padded f32 copies kept only for the pure-JAX reference check
        "w1_raw": w1, "b1_raw": b1, "w2_raw": w2, "b2_raw": b2,
    }


# ---------------------------------------------------------------------------
# Pure-JAX reference (same bf16-matmul / f32-accumulate recipe, un-padded)
# ---------------------------------------------------------------------------
def reference_forward(params, x):
    xb = x.astype(jnp.bfloat16)
    h = jnp.dot(xb, params["w1_raw"].astype(jnp.bfloat16),
                preferred_element_type=jnp.float32) + params["b1_raw"]
    h = jnp.maximum(h, 0.0)
    o = jnp.dot(h.astype(jnp.bfloat16), params["w2_raw"].astype(jnp.bfloat16),
                preferred_element_type=jnp.float32) + params["b2_raw"]
    return o


# ---------------------------------------------------------------------------
if __name__ == "__main__":
    key = jax.random.PRNGKey(0)
    kx, kx2, kp = jax.random.split(key, 3)
    params = init_params(kp)
    fwd = jax.jit(student_nn_forward)

    # Case 1: small batch of 896-dim tokens (m = 16, single ragged block).
    B, S = 2, 8
    x = jax.random.normal(kx, (B, S, IN_DIM), jnp.float32)
    out = jax.block_until_ready(fwd(params, x))
    assert out.shape == (B, S, OUT_DIM)
    ref = reference_forward(params, x)
    assert jnp.allclose(out, ref, rtol=1e-5, atol=1e-4), \
        float(jnp.max(jnp.abs(out - ref)))

    # Case 2: m = 280 (>= 256 -> 2 grid steps, ragged last block of 24 rows).
    x2 = jax.random.normal(kx2, (280, IN_DIM), jnp.float32)
    out2 = jax.block_until_ready(fwd(params, x2))
    assert out2.shape == (280, OUT_DIM)
    ref2 = reference_forward(params, x2)
    assert jnp.allclose(out2, ref2, rtol=1e-5, atol=1e-4), \
        float(jnp.max(jnp.abs(out2 - ref2)))

    print("KERNEL_OK")
</pallas_src>

<mosaic_0001>
module attributes {stable_mosaic.version = 11 : i64} {
  func.func @_student_kernel(%arg0: i32, %arg1: memref<128x896xf32, #tpu.memory_space<vmem>>, %arg2: memref<896x128xbf16, #tpu.memory_space<vmem>>, %arg3: memref<1x128xf32, #tpu.memory_space<vmem>>, %arg4: memref<128x640xbf16, #tpu.memory_space<vmem>>, %arg5: memref<1x640xf32, #tpu.memory_space<vmem>>, %arg6: memref<128x640xf32, #tpu.memory_space<vmem>>) attributes {dimension_semantics = [#tpu.dimension_semantics<parallel>], iteration_bounds = array<i64: 1>, scalar_prefetch = 0 : i64, scratch_operands = 0 : i64, tpu.core_type = #tpu.core_type<tc>, window_params = [{transform_indices = @transform_0, window_bounds = array<i64: 128, 896>}, {pipeline_mode = #tpu.pipeline_mode<synchronous>, transform_indices = @transform_1, window_bounds = array<i64: 896, 128>}, {pipeline_mode = #tpu.pipeline_mode<synchronous>, transform_indices = @transform_2, window_bounds = array<i64: 1, 128>}, {pipeline_mode = #tpu.pipeline_mode<synchronous>, transform_indices = @transform_3, window_bounds = array<i64: 128, 640>}, {pipeline_mode = #tpu.pipeline_mode<synchronous>, transform_indices = @transform_4, window_bounds = array<i64: 1, 640>}, {transform_indices = @transform_5, window_bounds = array<i64: 128, 640>}]} {
    %c0 = arith.constant 0 : index
    %c0_0 = arith.constant 0 : index
    %0 = vector.load %arg1[%c0, %c0_0] : memref<128x896xf32, #tpu.memory_space<vmem>>, vector<128x896xf32>
    %1 = arith.truncf %0 : vector<128x896xf32> to vector<128x896xbf16>
    %c0_1 = arith.constant 0 : index
    %c0_2 = arith.constant 0 : index
    %2 = vector.load %arg2[%c0_1, %c0_2] : memref<896x128xbf16, #tpu.memory_space<vmem>>, vector<896x128xbf16>
    %cst = arith.constant dense<0.000000e+00> : vector<128x128xf32>
    %3 = tpu.matmul %1, %2, %cst {dimension_numbers = #tpu.dot_dimension_numbers<[1], [0], [0], [1], [0, 0, 1, 1], [], []>} : vector<128x896xbf16>, vector<896x128xbf16>, vector<128x128xf32> -> vector<128x128xf32>
    %c0_3 = arith.constant 0 : index
    %c0_4 = arith.constant 0 : index
    %4 = vector.load %arg3[%c0_3, %c0_4] : memref<1x128xf32, #tpu.memory_space<vmem>>, vector<1x128xf32>
    %5 = vector.broadcast %4 : vector<1x128xf32> to vector<128x128xf32>
    %6 = arith.addf %3, %5 : vector<128x128xf32>
    %cst_5 = arith.constant 0.000000e+00 : f32
    %7 = vector.broadcast %cst_5 : f32 to vector<128x128xf32>
    %8 = arith.maximumf %6, %7 : vector<128x128xf32>
    %9 = arith.truncf %8 : vector<128x128xf32> to vector<128x128xbf16>
    %c0_6 = arith.constant 0 : index
    %c0_7 = arith.constant 0 : index
    %10 = vector.load %arg4[%c0_6, %c0_7] : memref<128x640xbf16, #tpu.memory_space<vmem>>, vector<128x640xbf16>
    %cst_8 = arith.constant dense<0.000000e+00> : vector<128x640xf32>
    %11 = tpu.matmul %9, %10, %cst_8 {dimension_numbers = #tpu.dot_dimension_numbers<[1], [0], [0], [1], [0, 0, 1, 1], [], []>} : vector<128x128xbf16>, vector<128x640xbf16>, vector<128x640xf32> -> vector<128x640xf32>
    %c0_9 = arith.constant 0 : index
    %c0_10 = arith.constant 0 : index
    %12 = vector.load %arg5[%c0_9, %c0_10] : memref<1x640xf32, #tpu.memory_space<vmem>>, vector<1x640xf32>
    %13 = vector.broadcast %12 : vector<1x640xf32> to vector<128x640xf32>
    %14 = arith.addf %11, %13 : vector<128x640xf32>
    %c0_11 = arith.constant 0 : index
    %c0_12 = arith.constant 0 : index
    %15 = vector.load %arg6[%c0_11, %c0_12] : memref<128x640xf32, #tpu.memory_space<vmem>>, vector<128x640xf32>
    tpu.vector_store %arg6[%c0_11, %c0_12], %14 {strides = array<i32>} : memref<128x640xf32, #tpu.memory_space<vmem>>, vector<128x640xf32>,
    return
  }
  func.func @transform_0(%arg0: i32) -> (i32, i32) {
    %c0_i32 = arith.constant 0 : i32
    %c0_i32_0 = arith.constant 0 : i32
    return %arg0, %c0_i32 : i32, i32
  }
  func.func @transform_1(%arg0: i32) -> (i32, i32) {
    %c0_i32 = arith.constant 0 : i32
    %c0_i32_0 = arith.constant 0 : i32
    %c0_i32_1 = arith.constant 0 : i32
    return %c0_i32, %c0_i32_0 : i32, i32
  }
  func.func @transform_2(%arg0: i32) -> (i32, i32) {
    %c0_i32 = arith.constant 0 : i32
    %c0_i32_0 = arith.constant 0 : i32
    %c0_i32_1 = arith.constant 0 : i32
    return %c0_i32, %c0_i32_0 : i32, i32
  }
  func.func @transform_3(%arg0: i32) -> (i32, i32) {
    %c0_i32 = arith.constant 0 : i32
    %c0_i32_0 = arith.constant 0 : i32
    %c0_i32_1 = arith.constant 0 : i32
    return %c0_i32, %c0_i32_0 : i32, i32
  }
  func.func @transform_4(%arg0: i32) -> (i32, i32) {
    %c0_i32 = arith.constant 0 : i32
    %c0_i32_0 = arith.constant 0 : i32
    %c0_i32_1 = arith.constant 0 : i32
    return %c0_i32, %c0_i32_0 : i32, i32
  }
  func.func @transform_5(%arg0: i32) -> (i32, i32) {
    %c0_i32 = arith.constant 0 : i32
    %c0_i32_0 = arith.constant 0 : i32
    return %arg0, %c0_i32 : i32, i32
  }
}

</mosaic_0001>

<llo_original>
// kernel: student_nn_forward.1
$region0: #{student_nn_forward.1}
  #allocation0 [shape = 'u32[]', space=smem, size = 0x4, offset = 0x4, fixed_abs, tag = 'smem constant byte address 0x4 - core index']
  #allocation1 [shape = 'u32[144,128]{1,0:T(1,128)}', space=vmem, size = 0x12000, scoped, tag = 'internal scratch']
  %s0 = inlined_call_operand.hbm [shape: f32[16,896], index: 0, kind: input, shape index: {}]
  %s1 = inlined_call_operand.hbm [shape: bf16[896,128], index: 1, kind: input, shape index: {}]
  %s2 = inlined_call_operand.vmem [shape: f32[1,128], index: 2, kind: input, shape index: {}]
  %s3 = inlined_call_operand.hbm [shape: bf16[128,640], index: 3, kind: input, shape index: {}]
  %s4 = inlined_call_operand.vmem [shape: f32[1,640], index: 4, kind: input, shape index: {}]
  %s5 = inlined_call_operand.hbm [shape: f32[16,640], index: 5, kind: output, shape index: {}]
  %s6 = sld [smem:[#allocation0]]
  $region42: #{student_nn_forward.1} parent=0
    _
  %s8 = ssub.s32 1, %s6
  %s9 = scalar_select 0, %s8, %s6
  $region1: #{student_nn_forward.1} parent=0
    #allocation2 [shape = 'u8[458752]{0}', space=vmem, size = 0x70000, scoped, tag = 'input window, operand 0, single buffered']
    #allocation3 [shape = 's32[1]{0}', space=sflag, size = 0x4, scoped, tag = 'scoped memory for student_nn_forward.1']
    #allocation4 [shape = 's32[1]{0}', space=sflag, size = 0x4, scoped, tag = 'scoped memory for student_nn_forward.1']
    #allocation5 [shape = 'u8[229376]{0}', space=vmem, size = 0x38000, scoped, tag = 'input window, operand 1, single buffered']
    #allocation6 [shape = 's32[1]{0}', space=sflag, size = 0x4, scoped, tag = 'scoped memory for student_nn_forward.1']
    #allocation7 [shape = 'u8[163840]{0}', space=vmem, size = 0x28000, scoped, tag = 'input window, operand 3, single buffered']
    #allocation8 [shape = 'u8[327680]{0}', space=vmem, size = 0x50000, scoped, tag = 'output window, operand 0, single buffered']
    %10 = vsyncpa [#allocation3], 0
    %11 = vsyncpa [#allocation6], 0
    %12 = vsyncpa [#allocation4], 0
    // Predicated region
    $region2: #{student_nn_forward.1} parent=1 // pred_check
      _
    $region3: #{student_nn_forward.1} parent=1 // pred_check_branch
      %14 = sbr.rel (0) target = $region5
    $region4: #{student_nn_forward.1} parent=1 // pred_region
      %s16 = ssub.s32 14336, 1792
      %17 = vsyncadd [#allocation3], %s16
      %s18 = sshll.u32 [#allocation2], 4
      %s19 = int_to_ptr.vmem [resolvable:$true] %s18
      %24 = dma.hbm_to_vmem [thread:$0]  %s0, 1792, %s19, [#allocation3], 896, 896, 56
    $region5: #{student_nn_forward.1} parent=1 // pred_fallthru
      _
    // Predicated region
    $region6: #{student_nn_forward.1} parent=1 // pred_check
      _
    $region7: #{student_nn_forward.1} parent=1 // pred_check_branch
      %26 = sbr.rel (0) target = $region9
    $region8: #{student_nn_forward.1} parent=1 // pred_region
      %s28 = ssub.s32 7168, 7168
      %29 = vsyncadd [#allocation6], %s28
      %s30 = sshll.u32 [#allocation5], 4
      %s31 = int_to_ptr.vmem [resolvable:$true] %s30
      %36 = dma.hbm_to_vmem [thread:$0]  %s1, 7168, %s31, [#allocation6], 64, 64, 4
    $region9: #{student_nn_forward.1} parent=1 // pred_fallthru
      _
    // Predicated region
    $region10: #{student_nn_forward.1} parent=1 // pred_check
      _
    $region11: #{student_nn_forward.1} parent=1 // pred_check_branch
      %38 = sbr.rel (0) target = $region13
    $region12: #{student_nn_forward.1} parent=1 // pred_region
      _
    $region13: #{student_nn_forward.1} parent=1 // pred_fallthru
      _
    // Predicated region
    $region14: #{student_nn_forward.1} parent=1 // pred_check
      _
    $region15: #{student_nn_forward.1} parent=1 // pred_check_branch
      %40 = sbr.rel (0) target = $region17
    $region16: #{student_nn_forward.1} parent=1 // pred_region
      %s42 = ssub.s32 5120, 5120
      %43 = vsyncadd [#allocation6], %s42
      %s44 = sshll.u32 [#allocation7], 4
      %s45 = int_to_ptr.vmem [resolvable:$true] %s44
      %50 = dma.hbm_to_vmem [thread:$0]  %s3, 5120, %s45, [#allocation6], 320, 320, 20
    $region17: #{student_nn_forward.1} parent=1 // pred_fallthru
      _
    // Predicated region
    $region18: #{student_nn_forward.1} parent=1 // pred_check
      _
    $region19: #{student_nn_forward.1} parent=1 // pred_check_branch
      %52 = sbr.rel (0) target = $region21
    $region20: #{student_nn_forward.1} parent=1 // pred_region
      _
    $region21: #{student_nn_forward.1} parent=1 // pred_fallthru
      _
    // Predicated region
    $region22: #{student_nn_forward.1} parent=1 // pred_check
      _
    $region23: #{student_nn_forward.1} parent=1 // pred_check_branch
      %54 = sbr.rel (0) target = $region25
    $region24: #{student_nn_forward.1} parent=1 // pred_region
      %55 = dma.done [#allocation3], 14336
    $region25: #{student_nn_forward.1} parent=1 // pred_fallthru
      _
    // Predicated region
    $region26: #{student_nn_forward.1} parent=1 // pred_check
      _
    $region27: #{student_nn_forward.1} parent=1 // pred_check_branch
      %57 = sbr.rel (0) target = $region29
    $region28: #{student_nn_forward.1} parent=1 // pred_region
      %58 = dma.done [#allocation6], 7168
    $region29: #{student_nn_forward.1} parent=1 // pred_fallthru
      _
    // Predicated region
    $region30: #{student_nn_forward.1} parent=1 // pred_check
      _
    $region31: #{student_nn_forward.1} parent=1 // pred_check_branch
      %60 = sbr.rel (0) target = $region33
    $region32: #{student_nn_forward.1} parent=1 // pred_region
      %61 = dma.done [#allocation6], 5120
    $region33: #{student_nn_forward.1} parent=1 // pred_fallthru
      _
    %v63 = vld [vmem:[#allocation2] sm:$0xff]
    %v64 = vld [vmem:[#allocation2 + $0x8] sm:$0xff]
    %v65 = vld [vmem:[#allocation2 + $0x10] sm:$0xff]
    %v66 = vld [vmem:[#allocation2 + $0x18] sm:$0xff]
    %v67 = vld [vmem:[#allocation2 + $0x20] sm:$0xff]
    %v68 = vld [vmem:[#allocation2 + $0x28] sm:$0xff]
    %v69 = vld [vmem:[#allocation2 + $0x30] sm:$0xff]
    %v70 = vld [vmem:[#allocation2 + $0x38] sm:$0xff]
    %v71 = vld [vmem:[#allocation2 + $0x40] sm:$0xff]
    %v72 = vld [vmem:[#allocation2 + $0x48] sm:$0xff]
    %v73 = vld [vmem:[#allocation2 + $0x50] sm:$0xff]
    %v74 = vld [vmem:[#allocation2 + $0x58] sm:$0xff]
    %v75 = vld [vmem:[#allocation2 + $0x60] sm:$0xff]
    %v76 = vld [vmem:[#allocation2 + $0x68] sm:$0xff]
    %v77 = vld [vmem:[#allocation2 + $0x70] sm:$0xff]
    %v78 = vld [vmem:[#allocation2 + $0x78] sm:$0xff]
    %v79 = vld [vmem:[#allocation2 + $0x80] sm:$0xff]
    %v80 = vld [vmem:[#allocation2 + $0x88] sm:$0xff]
    %v81 = vld [vmem:[#allocation2 + $0x90] sm:$0xff]
    %v82 = vld [vmem:[#allocation2 + $0x98] sm:$0xff]
    %v83 = vld [vmem:[#allocation2 + $0xa0] sm:$0xff]
    %v84 = vld [vmem:[#allocation2 + $0xa8] sm:$0xff]
    %v85 = vld [vmem:[#allocation2 + $0xb0] sm:$0xff]
    %v86 = vld [vmem:[#allocation2 + $0xb8] sm:$0xff]
    %v87 = vld [vmem:[#allocation2 + $0xc0] sm:$0xff]
    %v88 = vld [vmem:[#allocation2 + $0xc8] sm:$0xff]
    %v89 = vld [vmem:[#allocation2 + $0xd0] sm:$0xff]
    %v90 = vld [vmem:[#allocation2 + $0xd8] sm:$0xff]
    %v91 = vld [vmem:[#allocation2 + $0xe0] sm:$0xff]
    %v92 = vld [vmem:[#allocation2 + $0xe8] sm:$0xff]
    %v93 = vld [vmem:[#allocation2 + $0xf0] sm:$0xff]
    %v94 = vld [vmem:[#allocation2 + $0xf8] sm:$0xff]
    %v95 = vld [vmem:[#allocation2 + $0x100] sm:$0xff]
    %v96 = vld [vmem:[#allocation2 + $0x108] sm:$0xff]
    %v97 = vld [vmem:[#allocation2 + $0x110] sm:$0xff]
    %v98 = vld [vmem:[#allocation2 + $0x118] sm:$0xff]
    %v99 = vld [vmem:[#allocation2 + $0x120] sm:$0xff]
    %v100 = vld [vmem:[#allocation2 + $0x128] sm:$0xff]
    %v101 = vld [vmem:[#allocation2 + $0x130] sm:$0xff]
    %v102 = vld [vmem:[#allocation2 + $0x138] sm:$0xff]
    %v103 = vld [vmem:[#allocation2 + $0x140] sm:$0xff]
    %v104 = vld [vmem:[#allocation2 + $0x148] sm:$0xff]
    %v105 = vld [vmem:[#allocation2 + $0x150] sm:$0xff]
    %v106 = vld [vmem:[#allocation2 + $0x158] sm:$0xff]
    %v107 = vld [vmem:[#allocation2 + $0x160] sm:$0xff]
    %v108 = vld [vmem:[#allocation2 + $0x168] sm:$0xff]
    %v109 = vld [vmem:[#allocation2 + $0x170] sm:$0xff]
    %v110 = vld [vmem:[#allocation2 + $0x178] sm:$0xff]
    %v111 = vld [vmem:[#allocation2 + $0x180] sm:$0xff]
    %v112 = vld [vmem:[#allocation2 + $0x188] sm:$0xff]
    %v113 = vld [vmem:[#allocation2 + $0x190] sm:$0xff]
    %v114 = vld [vmem:[#allocation2 + $0x198] sm:$0xff]
    %v115 = vld [vmem:[#allocation2 + $0x1a0] sm:$0xff]
    %v116 = vld [vmem:[#allocation2 + $0x1a8] sm:$0xff]
    %v117 = vld [vmem:[#allocation2 + $0x1b0] sm:$0xff]
    %v118 = vld [vmem:[#allocation2 + $0x1b8] sm:$0xff]
    %v119 = vld [vmem:[#allocation2 + $0x1c0] sm:$0xff]
    %v120 = vld [vmem:[#allocation2 + $0x1c8] sm:$0xff]
    %v121 = vld [vmem:[#allocation2 + $0x1d0] sm:$0xff]
    %v122 = vld [vmem:[#allocation2 + $0x1d8] sm:$0xff]
    %v123 = vld [vmem:[#allocation2 + $0x1e0] sm:$0xff]
    %v124 = vld [vmem:[#allocation2 + $0x1e8] sm:$0xff]
    %v125 = vld [vmem:[#allocation2 + $0x1f0] sm:$0xff]
    %v126 = vld [vmem:[#allocation2 + $0x1f8] sm:$0xff]
    %v127 = vld [vmem:[#allocation2 + $0x200] sm:$0xff]
    %v128 = vld [vmem:[#allocation2 + $0x208] sm:$0xff]
    %v129 = vld [vmem:[#allocation2 + $0x210] sm:$0xff]
    %v130 = vld [vmem:[#allocation2 + $0x218] sm:$0xff]
    %v131 = vld [vmem:[#allocation2 + $0x220] sm:$0xff]
    %v132 = vld [vmem:[#allocation2 + $0x228] sm:$0xff]
    %v133 = vld [vmem:[#allocation2 + $0x230] sm:$0xff]
    %v134 = vld [vmem:[#allocation2 + $0x238] sm:$0xff]
    %v135 = vld [vmem:[#allocation2 + $0x240] sm:$0xff]
    %v136 = vld [vmem:[#allocation2 + $0x248] sm:$0xff]
    %v137 = vld [vmem:[#allocation2 + $0x250] sm:$0xff]
    %v138 = vld [vmem:[#allocation2 + $0x258] sm:$0xff]
    %v139 = vld [vmem:[#allocation2 + $0x260] sm:$0xff]
    %v140 = vld [vmem:[#allocation2 + $0x268] sm:$0xff]
    %v141 = vld [vmem:[#allocation2 + $0x270] sm:$0xff]
    %v142 = vld [vmem:[#allocation2 + $0x278] sm:$0xff]
    %v143 = vld [vmem:[#allocation2 + $0x280] sm:$0xff]
    %v144 = vld [vmem:[#allocation2 + $0x288] sm:$0xff]
    %v145 = vld [vmem:[#allocation2 + $0x290] sm:$0xff]
    %v146 = vld [vmem:[#allocation2 + $0x298] sm:$0xff]
    %v147 = vld [vmem:[#allocation2 + $0x2a0] sm:$0xff]
    %v148 = vld [vmem:[#allocation2 + $0x2a8] sm:$0xff]
    %v149 = vld [vmem:[#allocation2 + $0x2b0] sm:$0xff]
    %v150 = vld [vmem:[#allocation2 + $0x2b8] sm:$0xff]
    %v151 = vld [vmem:[#allocation2 + $0x2c0] sm:$0xff]
    %v152 = vld [vmem:[#allocation2 + $0x2c8] sm:$0xff]
    %v153 = vld [vmem:[#allocation2 + $0x2d0] sm:$0xff]
    %v154 = vld [vmem:[#allocation2 + $0x2d8] sm:$0xff]
    %v155 = vld [vmem:[#allocation2 + $0x2e0] sm:$0xff]
    %v156 = vld [vmem:[#allocation2 + $0x2e8] sm:$0xff]
    %v157 = vld [vmem:[#allocation2 + $0x2f0] sm:$0xff]
    %v158 = vld [vmem:[#allocation2 + $0x2f8] sm:$0xff]
    %v159 = vld [vmem:[#allocation2 + $0x300] sm:$0xff]
    %v160 = vld [vmem:[#allocation2 + $0x308] sm:$0xff]
    %v161 = vld [vmem:[#allocation2 + $0x310] sm:$0xff]
    %v162 = vld [vmem:[#allocation2 + $0x318] sm:$0xff]
    %v163 = vld [vmem:[#allocation2 + $0x320] sm:$0xff]
    %v164 = vld [vmem:[#allocation2 + $0x328] sm:$0xff]
    %v165 = vld [vmem:[#allocation2 + $0x330] sm:$0xff]
    %v166 = vld [vmem:[#allocation2 + $0x338] sm:$0xff]
    %v167 = vld [vmem:[#allocation2 + $0x340] sm:$0xff]
    %v168 = vld [vmem:[#allocation2 + $0x348] sm:$0xff]
    %v169 = vld [vmem:[#allocation2 + $0x350] sm:$0xff]
    %v170 = vld [vmem:[#allocation2 + $0x358] sm:$0xff]
    %v171 = vld [vmem:[#allocation2 + $0x360] sm:$0xff]
    %v172 = vld [vmem:[#allocation2 + $0x368] sm:$0xff]
    %v173 = vld [vmem:[#allocation2 + $0x370] sm:$0xff]
    %v174 = vld [vmem:[#allocation2 + $0x378] sm:$0xff]
    %v175 = vpack.c.bf16 %v70, %v63
    %v176 = vpack.c.bf16 %v71, %v64
    %v177 = vpack.c.bf16 %v72, %v65
    %v178 = vpack.c.bf16 %v73, %v66
    %v179 = vpack.c.bf16 %v74, %v67
    %v180 = vpack.c.bf16 %v75, %v68
    %v181 = vpack.c.bf16 %v76, %v69
    %v182 = vpack.c.bf16 %v84, %v77
    %v183 = vpack.c.bf16 %v85, %v78
    %v184 = vpack.c.bf16 %v86, %v79
    %v185 = vpack.c.bf16 %v87, %v80
    %v186 = vpack.c.bf16 %v88, %v81
    %v187 = vpack.c.bf16 %v89, %v82
    %v188 = vpack.c.bf16 %v90, %v83
    %v189 = vpack.c.bf16 %v98, %v91
    %v190 = vpack.c.bf16 %v99, %v92
    %v191 = vpack.c.bf16 %v100, %v93
    %v192 = vpack.c.bf16 %v101, %v94
    %v193 = vpack.c.bf16 %v102, %v95
    %v194 = vpack.c.bf16 %v103, %v96
    %v195 = vpack.c.bf16 %v104, %v97
    %v196 = vpack.c.bf16 %v112, %v105
    %v197 = vpack.c.bf16 %v113, %v106
    %v198 = vpack.c.bf16 %v114, %v107
    %v199 = vpack.c.bf16 %v115, %v108
    %v200 = vpack.c.bf16 %v116, %v109
    %v201 = vpack.c.bf16 %v117, %v110
    %v202 = vpack.c.bf16 %v118, %v111
    %v203 = vpack.c.bf16 %v126, %v119
    %v204 = vpack.c.bf16 %v127, %v120
    %v205 = vpack.c.bf16 %v128, %v121
    %v206 = vpack.c.bf16 %v129, %v122
    %v207 = vpack.c.bf16 %v130, %v123
    %v208 = vpack.c.bf16 %v131, %v124
    %v209 = vpack.c.bf16 %v132, %v125
    %v210 = vpack.c.bf16 %v140, %v133
    %v211 = vpack.c.bf16 %v141, %v134
    %v212 = vpack.c.bf16 %v142, %v135
    %v213 = vpack.c.bf16 %v143, %v136
    %v214 = vpack.c.bf16 %v144, %v137
    %v215 = vpack.c.bf16 %v145, %v138
    %v216 = vpack.c.bf16 %v146, %v139
    %v217 = vpack.c.bf16 %v154, %v147
    %v218 = vpack.c.bf16 %v155, %v148
    %v219 = vpack.c.bf16 %v156, %v149
    %v220 = vpack.c.bf16 %v157, %v150
    %v221 = vpack.c.bf16 %v158, %v151
    %v222 = vpack.c.bf16 %v159, %v152
    %v223 = vpack.c.bf16 %v160, %v153
    %v224 = vpack.c.bf16 %v168, %v161
    %v225 = vpack.c.bf16 %v169, %v162
    %v226 = vpack.c.bf16 %v170, %v163
    %v227 = vpack.c.bf16 %v171, %v164
    %v228 = vpack.c.bf16 %v172, %v165
    %v229 = vpack.c.bf16 %v173, %v166
    %v230 = vpack.c.bf16 %v174, %v167
    %v231 = vld [vmem:[#allocation5] sm:$0xf]
    %v232 = vld [vmem:[#allocation5 + $0x4] sm:$0xf]
    %v233 = vld [vmem:[#allocation5 + $0x8] sm:$0xf]
    %v234 = vld [vmem:[#allocation5 + $0xc] sm:$0xf]
    %v235 = vld [vmem:[#allocation5 + $0x10] sm:$0xf]
    %v236 = vld [vmem:[#allocation5 + $0x14] sm:$0xf]
    %v237 = vld [vmem:[#allocation5 + $0x18] sm:$0xf]
    %v238 = vld [vmem:[#allocation5 + $0x1c] sm:$0xf]
    %v239 = vld [vmem:[#allocation5 + $0x20] sm:$0xf]
    %v240 = vld [vmem:[#allocation5 + $0x24] sm:$0xf]
    %v241 = vld [vmem:[#allocation5 + $0x28] sm:$0xf]
    %v242 = vld [vmem:[#allocation5 + $0x2c] sm:$0xf]
    %v243 = vld [vmem:[#allocation5 + $0x30] sm:$0xf]
    %v244 = vld [vmem:[#allocation5 + $0x34] sm:$0xf]
    %v245 = vld [vmem:[#allocation5 + $0x38] sm:$0xf]
    %v246 = vld [vmem:[#allocation5 + $0x3c] sm:$0xf]
    %v247 = vld [vmem:[#allocation5 + $0x40] sm:$0xf]
    %v248 = vld [vmem:[#allocation5 + $0x44] sm:$0xf]
    %v249 = vld [vmem:[#allocation5 + $0x48] sm:$0xf]
    %v250 = vld [vmem:[#allocation5 + $0x4c] sm:$0xf]
    %v251 = vld [vmem:[#allocation5 + $0x50] sm:$0xf]
    %v252 = vld [vmem:[#allocation5 + $0x54] sm:$0xf]
    %v253 = vld [vmem:[#allocation5 + $0x58] sm:$0xf]
    %v254 = vld [vmem:[#allocation5 + $0x5c] sm:$0xf]
    %v255 = vld [vmem:[#allocation5 + $0x60] sm:$0xf]
    %v256 = vld [vmem:[#allocation5 + $0x64] sm:$0xf]
    %v257 = vld [vmem:[#allocation5 + $0x68] sm:$0xf]
    %v258 = vld [vmem:[#allocation5 + $0x6c] sm:$0xf]
    %v259 = vld [vmem:[#allocation5 + $0x70] sm:$0xf]
    %v260 = vld [vmem:[#allocation5 + $0x74] sm:$0xf]
    %v261 = vld [vmem:[#allocation5 + $0x78] sm:$0xf]
    %v262 = vld [vmem:[#allocation5 + $0x7c] sm:$0xf]
    %v263 = vld [vmem:[#allocation5 + $0x80] sm:$0xf]
    %v264 = vld [vmem:[#allocation5 + $0x84] sm:$0xf]
    %v265 = vld [vmem:[#allocation5 + $0x88] sm:$0xf]
    %v266 = vld [vmem:[#allocation5 + $0x8c] sm:$0xf]
    %v267 = vld [vmem:[#allocation5 + $0x90] sm:$0xf]
    %v268 = vld [vmem:[#allocation5 + $0x94] sm:$0xf]
    %v269 = vld [vmem:[#allocation5 + $0x98] sm:$0xf]
    %v270 = vld [vmem:[#allocation5 + $0x9c] sm:$0xf]
    %v271 = vld [vmem:[#allocation5 + $0xa0] sm:$0xf]
    %v272 = vld [vmem:[#allocation5 + $0xa4] sm:$0xf]
    %v273 = vld [vmem:[#allocation5 + $0xa8] sm:$0xf]
    %v274 = vld [vmem:[#allocation5 + $0xac] sm:$0xf]
    %v275 = vld [vmem:[#allocation5 + $0xb0] sm:$0xf]
    %v276 = vld [vmem:[#allocation5 + $0xb4] sm:$0xf]
    %v277 = vld [vmem:[#allocation5 + $0xb8] sm:$0xf]
    %v278 = vld [vmem:[#allocation5 + $0xbc] sm:$0xf]
    %v279 = vld [vmem:[#allocation5 + $0xc0] sm:$0xf]
    %v280 = vld [vmem:[#allocation5 + $0xc4] sm:$0xf]
    %v281 = vld [vmem:[#allocation5 + $0xc8] sm:$0xf]
    %v282 = vld [vmem:[#allocation5 + $0xcc] sm:$0xf]
    %v283 = vld [vmem:[#allocation5 + $0xd0] sm:$0xf]
    %v284 = vld [vmem:[#allocation5 + $0xd4] sm:$0xf]
    %v285 = vld [vmem:[#allocation5 + $0xd8] sm:$0xf]
    %v286 = vld [vmem:[#allocation5 + $0xdc] sm:$0xf]
    %v287 = vld [vmem:[#allocation5 + $0xe0] sm:$0xf]
    %v288 = vld [vmem:[#allocation5 + $0xe4] sm:$0xf]
    %v289 = vld [vmem:[#allocation5 + $0xe8] sm:$0xf]
    %v290 = vld [vmem:[#allocation5 + $0xec] sm:$0xf]
    %v291 = vld [vmem:[#allocation5 + $0xf0] sm:$0xf]
    %v292 = vld [vmem:[#allocation5 + $0xf4] sm:$0xf]
    %v293 = vld [vmem:[#allocation5 + $0xf8] sm:$0xf]
    %v294 = vld [vmem:[#allocation5 + $0xfc] sm:$0xf]
    %v295 = vld [vmem:[#allocation5 + $0x100] sm:$0xf]
    %v296 = vld [vmem:[#allocation5 + $0x104] sm:$0xf]
    %v297 = vld [vmem:[#allocation5 + $0x108] sm:$0xf]
    %v298 = vld [vmem:[#allocation5 + $0x10c] sm:$0xf]
    %v299 = vld [vmem:[#allocation5 + $0x110] sm:$0xf]
    %v300 = vld [vmem:[#allocation5 + $0x114] sm:$0xf]
    %v301 = vld [vmem:[#allocation5 + $0x118] sm:$0xf]
    %v302 = vld [vmem:[#allocation5 + $0x11c] sm:$0xf]
    %v303 = vld [vmem:[#allocation5 + $0x120] sm:$0xf]
    %v304 = vld [vmem:[#allocation5 + $0x124] sm:$0xf]
    %v305 = vld [vmem:[#allocation5 + $0x128] sm:$0xf]
    %v306 = vld [vmem:[#allocation5 + $0x12c] sm:$0xf]
    %v307 = vld [vmem:[#allocation5 + $0x130] sm:$0xf]
    %v308 = vld [vmem:[#allocation5 + $0x134] sm:$0xf]
    %v309 = vld [vmem:[#allocation5 + $0x138] sm:$0xf]
    %v310 = vld [vmem:[#allocation5 + $0x13c] sm:$0xf]
    %v311 = vld [vmem:[#allocation5 + $0x140] sm:$0xf]
    %v312 = vld [vmem:[#allocation5 + $0x144] sm:$0xf]
    %v313 = vld [vmem:[#allocation5 + $0x148] sm:$0xf]
    %v314 = vld [vmem:[#allocation5 + $0x14c] sm:$0xf]
    %v315 = vld [vmem:[#allocation5 + $0x150] sm:$0xf]
    %v316 = vld [vmem:[#allocation5 + $0x154] sm:$0xf]
    %v317 = vld [vmem:[#allocation5 + $0x158] sm:$0xf]
    %v318 = vld [vmem:[#allocation5 + $0x15c] sm:$0xf]
    %v319 = vld [vmem:[#allocation5 + $0x160] sm:$0xf]
    %v320 = vld [vmem:[#allocation5 + $0x164] sm:$0xf]
    %v321 = vld [vmem:[#allocation5 + $0x168] sm:$0xf]
    %v322 = vld [vmem:[#allocation5 + $0x16c] sm:$0xf]
    %v323 = vld [vmem:[#allocation5 + $0x170] sm:$0xf]
    %v324 = vld [vmem:[#allocation5 + $0x174] sm:$0xf]
    %v325 = vld [vmem:[#allocation5 + $0x178] sm:$0xf]
    %v326 = vld [vmem:[#allocation5 + $0x17c] sm:$0xf]
    %v327 = vld [vmem:[#allocation5 + $0x180] sm:$0xf]
    %v328 = vld [vmem:[#allocation5 + $0x184] sm:$0xf]
    %v329 = vld [vmem:[#allocation5 + $0x188] sm:$0xf]
    %v330 = vld [vmem:[#allocation5 + $0x18c] sm:$0xf]
    %v331 = vld [vmem:[#allocation5 + $0x190] sm:$0xf]
    %v332 = vld [vmem:[#allocation5 + $0x194] sm:$0xf]
    %v333 = vld [vmem:[#allocation5 + $0x198] sm:$0xf]
    %v334 = vld [vmem:[#allocation5 + $0x19c] sm:$0xf]
    %v335 = vld [vmem:[#allocation5 + $0x1a0] sm:$0xf]
    %v336 = vld [vmem:[#allocation5 + $0x1a4] sm:$0xf]
    %v337 = vld [vmem:[#allocation5 + $0x1a8] sm:$0xf]
    %v338 = vld [vmem:[#allocation5 + $0x1ac] sm:$0xf]
    %v339 = vld [vmem:[#allocation5 + $0x1b0] sm:$0xf]
    %v340 = vld [vmem:[#allocation5 + $0x1b4] sm:$0xf]
    %v341 = vld [vmem:[#allocation5 + $0x1b8] sm:$0xf]
    %v342 = vld [vmem:[#allocation5 + $0x1bc] sm:$0xf]
    %v343 = vld [vmem:[%s2] sm:$0x1]
    %v345 = vlaneseq
    %v346 = vshrl.u32 %v345, 7
    %v347 = vsub.s32 0, %v346
    %v348 = vrot.slane %v343, %v347
    %v462 = vunpack.c.l.b16 %v231
    %v463 = vunpack.c.l.b16 %v232
    %v464 = vunpack.c.l.b16 %v233
    %v465 = vunpack.c.l.b16 %v234
    %v466 = vunpack.c.l.b16 %v235
    %v467 = vunpack.c.l.b16 %v236
    %v468 = vunpack.c.l.b16 %v237
    %v469 = vunpack.c.l.b16 %v238
    %v470 = vunpack.c.l.b16 %v239
    %v471 = vunpack.c.l.b16 %v240
    %v472 = vunpack.c.l.b16 %v241
    %v473 = vunpack.c.l.b16 %v242
    %v474 = vunpack.c.l.b16 %v243
    %v475 = vunpack.c.l.b16 %v244
    %v476 = vunpack.c.l.b16 %v245
    %v477 = vunpack.c.l.b16 %v246
    %v478 = vunpack.c.l.b16 %v247
    %v479 = vunpack.c.l.b16 %v248
    %v480 = vunpack.c.l.b16 %v249
    %v481 = vunpack.c.l.b16 %v250
    %v482 = vunpack.c.l.b16 %v251
    %v483 = vunpack.c.l.b16 %v252
    %v484 = vunpack.c.l.b16 %v253
    %v485 = vunpack.c.l.b16 %v254
    %v486 = vunpack.c.l.b16 %v255
    %v487 = vunpack.c.l.b16 %v256
    %v488 = vunpack.c.l.b16 %v257
    %v489 = vunpack.c.l.b16 %v258
    %v490 = vunpack.c.l.b16 %v259
    %v491 = vunpack.c.l.b16 %v260
    %v492 = vunpack.c.l.b16 %v261
    %v493 = vunpack.c.l.b16 %v262
    %v494 = vunpack.c.l.b16 %v263
    %v495 = vunpack.c.l.b16 %v264
    %v496 = vunpack.c.l.b16 %v265
    %v497 = vunpack.c.l.b16 %v266
    %v498 = vunpack.c.l.b16 %v267
    %v499 = vunpack.c.l.b16 %v268
    %v500 = vunpack.c.l.b16 %v269
    %v501 = vunpack.c.l.b16 %v270
    %v502 = vunpack.c.l.b16 %v271
    %v503 = vunpack.c.l.b16 %v272
    %v504 = vunpack.c.l.b16 %v273
    %v505 = vunpack.c.l.b16 %v274
    %v506 = vunpack.c.l.b16 %v275
    %v507 = vunpack.c.l.b16 %v276
    %v508 = vunpack.c.l.b16 %v277
    %v509 = vunpack.c.l.b16 %v278
    %v510 = vunpack.c.l.b16 %v279
    %v511 = vunpack.c.l.b16 %v280
    %v512 = vunpack.c.l.b16 %v281
    %v513 = vunpack.c.l.b16 %v282
    %v514 = vunpack.c.l.b16 %v283
    %v515 = vunpack.c.l.b16 %v284
    %v516 = vunpack.c.l.b16 %v285
    %v517 = vunpack.c.l.b16 %v286
    %v518 = vunpack.c.l.b16 %v287
    %v519 = vunpack.c.l.b16 %v288
    %v520 = vunpack.c.l.b16 %v289
    %v521 = vunpack.c.l.b16 %v290
    %v522 = vunpack.c.l.b16 %v291
    %v523 = vunpack.c.l.b16 %v292
    %v524 = vunpack.c.l.b16 %v293
    %v525 = vunpack.c.l.b16 %v294
    %v526 = vunpack.c.l.b16 %v295
    %v527 = vunpack.c.l.b16 %v296
    %v528 = vunpack.c.l.b16 %v297
    %v529 = vunpack.c.l.b16 %v298
    %v530 = vunpack.c.l.b16 %v299
    %v531 = vunpack.c.l.b16 %v300
    %v532 = vunpack.c.l.b16 %v301
    %v533 = vunpack.c.l.b16 %v302
    %v534 = vunpack.c.l.b16 %v303
    %v535 = vunpack.c.l.b16 %v304
    %v536 = vunpack.c.l.b16 %v305
    %v537 = vunpack.c.l.b16 %v306
    %v538 = vunpack.c.l.b16 %v307
    %v539 = vunpack.c.l.b16 %v308
    %v540 = vunpack.c.l.b16 %v309
    %v541 = vunpack.c.l.b16 %v310
    %v542 = vunpack.c.l.b16 %v311
    %v543 = vunpack.c.l.b16 %v312
    %v544 = vunpack.c.l.b16 %v313
    %v545 = vunpack.c.l.b16 %v314
    %v546 = vunpack.c.l.b16 %v315
    %v547 = vunpack.c.l.b16 %v316
    %v548 = vunpack.c.l.b16 %v317
    %v549 = vunpack.c.l.b16 %v318
    %v550 = vunpack.c.l.b16 %v319
    %v551 = vunpack.c.l.b16 %v320
    %v552 = vunpack.c.l.b16 %v321
    %v553 = vunpack.c.l.b16 %v322
    %v554 = vunpack.c.l.b16 %v323
    %v555 = vunpack.c.l.b16 %v324
    %v556 = vunpack.c.l.b16 %v325
    %v557 = vunpack.c.l.b16 %v326
    %v558 = vunpack.c.l.b16 %v327
    %v559 = vunpack.c.l.b16 %v328
    %v560 = vunpack.c.l.b16 %v329
    %v561 = vunpack.c.l.b16 %v330
    %v562 = vunpack.c.l.b16 %v331
    %v563 = vunpack.c.l.b16 %v332
    %v564 = vunpack.c.l.b16 %v333
    %v565 = vunpack.c.l.b16 %v334
    %v566 = vunpack.c.l.b16 %v335
    %v567 = vunpack.c.l.b16 %v336
    %v568 = vunpack.c.l.b16 %v337
    %v569 = vunpack.c.l.b16 %v338
    %v570 = vunpack.c.l.b16 %v339
    %v571 = vunpack.c.l.b16 %v340
    %v572 = vunpack.c.l.b16 %v341
    %v573 = vunpack.c.l.b16 %v342
    %v574 = vpack.c.b16 %v463, %v462
    %v575 = vpack.c.b16 %v465, %v464
    %v576 = vpack.c.b16 %v467, %v466
    %v577 = vpack.c.b16 %v469, %v468
    %v578 = vpack.c.b16 %v471, %v470
    %v579 = vpack.c.b16 %v473, %v472
    %v580 = vpack.c.b16 %v475, %v474
    %v581 = vpack.c.b16 %v477, %v476
    %v582 = vpack.c.b16 %v479, %v478
    %v583 = vpack.c.b16 %v481, %v480
    %v584 = vpack.c.b16 %v483, %v482
    %v585 = vpack.c.b16 %v485, %v484
    %v586 = vpack.c.b16 %v487, %v486
    %v587 = vpack.c.b16 %v489, %v488
    %v588 = vpack.c.b16 %v491, %v490
    %v589 = vpack.c.b16 %v493, %v492
    %v590 = vpack.c.b16 %v495, %v494
    %v591 = vpack.c.b16 %v497, %v496
    %v592 = vpack.c.b16 %v499, %v498
    %v593 = vpack.c.b16 %v501, %v500
    %v594 = vpack.c.b16 %v503, %v502
    %v595 = vpack.c.b16 %v505, %v504
    %v596 = vpack.c.b16 %v507, %v506
    %v597 = vpack.c.b16 %v509, %v508
    %v598 = vpack.c.b16 %v511, %v510
    %v599 = vpack.c.b16 %v513, %v512
    %v600 = vpack.c.b16 %v515, %v514
    %v601 = vpack.c.b16 %v517, %v516
    %v602 = vpack.c.b16 %v519, %v518
    %v603 = vpack.c.b16 %v521, %v520
    %v604 = vpack.c.b16 %v523, %v522
    %v605 = vpack.c.b16 %v525, %v524
    %v606 = vpack.c.b16 %v527, %v526
    %v607 = vpack.c.b16 %v529, %v528
    %v608 = vpack.c.b16 %v531, %v530
    %v609 = vpack.c.b16 %v533, %v532
    %v610 = vpack.c.b16 %v535, %v534
    %v611 = vpack.c.b16 %v537, %v536
    %v612 = vpack.c.b16 %v539, %v538
    %v613 = vpack.c.b16 %v541, %v540
    %v614 = vpack.c.b16 %v543, %v542
    %v615 = vpack.c.b16 %v545, %v544
    %v616 = vpack.c.b16 %v547, %v546
    %v617 = vpack.c.b16 %v549, %v548
    %v618 = vpack.c.b16 %v551, %v550
    %v619 = vpack.c.b16 %v553, %v552
    %v620 = vpack.c.b16 %v555, %v554
    %v621 = vpack.c.b16 %v557, %v556
    %v622 = vpack.c.b16 %v559, %v558
    %v623 = vpack.c.b16 %v561, %v560
    %v624 = vpack.c.b16 %v563, %v562
    %v625 = vpack.c.b16 %v565, %v564
    %v626 = vpack.c.b16 %v567, %v566
    %v627 = vpack.c.b16 %v569, %v568
    %v628 = vpack.c.b16 %v571, %v570
    %v629 = vpack.c.b16 %v573, %v572
    %686 = vmatprep.subr.bf16.mxu0 0
    %687 = vmatpush1.bf16.msra.mxu0 %v574
    %688 = vmatprep.subr.bf16.mxu0 0
    %689 = vmatpush1.bf16.msra.mxu0 %v575
    %690 = vmatprep.subr.bf16.mxu0 0
    %691 = vmatpush1.bf16.msra.mxu0 %v576
    %692 = vmatprep.subr.bf16.mxu0 0
    %693 = vmatpush1.bf16.msra.mxu0 %v577
    %694 = vmatprep.subr.bf16.mxu0 0
    %695 = vmatpush1.bf16.msra.mxu0 %v578
    %696 = vmatprep.subr.bf16.mxu0 0
    %697 = vmatpush1.bf16.msra.mxu0 %v579
    %698 = vmatprep.subr.bf16.mxu0 0
    %699 = vmatpush1.bf16.msra.mxu0 %v580
    %700 = vmatprep.subr.bf16.mxu0 0
    %701 = vmatpush1.bf16.msra.mxu0 %v581
    %702 = vmatprep.subr.bf16.mxu0 0
    %703 = vmatpush1.bf16.msra.mxu0 %v582
    %704 = vmatprep.subr.bf16.mxu0 0
    %705 = vmatpush1.bf16.msra.mxu0 %v583
    %706 = vmatprep.subr.bf16.mxu0 0
    %707 = vmatpush1.bf16.msra.mxu0 %v584
    %708 = vmatprep.subr.bf16.mxu0 0
    %709 = vmatpush1.bf16.msra.mxu0 %v585
    %710 = vmatprep.subr.bf16.mxu0 0
    %711 = vmatpush1.bf16.msra.mxu0 %v586
    %712 = vmatprep.subr.bf16.mxu0 0
    %713 = vmatpush1.bf16.msra.mxu0 %v587
    %714 = vmatprep.subr.bf16.mxu0 0
    %715 = vmatpush1.bf16.msra.mxu0 %v588
    %716 = vmatprep.subr.bf16.mxu0 0
    %717 = vmatpush1.bf16.msra.mxu0 %v589
    %718 = vmatprep.mubr.bf16.mxu0 %v176
    %719 = vmatmul.mubr.bf16.gmra.mrb[0].mxu0 %v175
    %v720 = vpop.f32.mrb[0].mxu0
    %v721 = vadd.f32 %v348, %v720
    %v722 = vpop.f32.mrb[0].mxu0
    %v723 = vpop.f32.mrb[0].mxu0
    %v724 = vadd.f32 %v348, %v723
    %v725 = vpop.f32.mrb[0].mxu0
    %726 = vmatprep.mubr.bf16.mxu0 %v183
    %727 = vmatmul.mubr.bf16.gmra.mrb[0].mxu0 %v182
    %v728 = vpop.f32.mrb[0].mxu0
    %v729 = vadd.f32 %v348, %v728
    %v730 = vpop.f32.mrb[0].mxu0
    %v731 = vpop.f32.mrb[0].mxu0
    %v732 = vadd.f32 %v348, %v731
    %v733 = vpop.f32.mrb[0].mxu0
    %734 = vmatprep.mubr.bf16.mxu0 %v190
    %735 = vmatmul.mubr.bf16.gmra.mrb[0].mxu0 %v189
    %v736 = vpop.f32.mrb[0].mxu0
    %v737 = vadd.f32 %v348, %v736
    %v738 = vpop.f32.mrb[0].mxu0
    %v739 = vpop.f32.mrb[0].mxu0
    %v740 = vadd.f32 %v348, %v739
    %v741 = vpop.f32.mrb[0].mxu0
    %742 = vmatprep.mubr.bf16.mxu0 %v197
    %743 = vmatmul.mubr.bf16.gmra.mrb[0].mxu0 %v196
    %v744 = vpop.f32.mrb[0].mxu0
    %v745 = vadd.f32 %v348, %v744
    %v746 = vpop.f32.mrb[0].mxu0
    %v747 = vpop.f32.mrb[0].mxu0
    %v748 = vadd.f32 %v348, %v747
    %v749 = vpop.f32.mrb[0].mxu0
    %750 = vmatprep.mubr.bf16.mxu0 %v204
    %751 = vmatmul.mubr.bf16.gmra.mrb[0].mxu0 %v203
    %v752 = vpop.f32.mrb[0].mxu0
    %v753 = vadd.f32 %v348, %v752
    %v754 = vpop.f32.mrb[0].mxu0
    %v755 = vpop.f32.mrb[0].mxu0
    %v756 = vadd.f32 %v348, %v755
    %v757 = vpop.f32.mrb[0].mxu0
    %758 = vmatprep.mubr.bf16.mxu0 %v211
    %759 = vmatmul.mubr.bf16.gmra.mrb[0].mxu0 %v210
    %v760 = vpop.f32.mrb[0].mxu0
    %v761 = vadd.f32 %v348, %v760
    %v762 = vpop.f32.mrb[0].mxu0
    %v763 = vpop.f32.mrb[0].mxu0
    %v764 = vadd.f32 %v348, %v763
    %v765 = vpop.f32.mrb[0].mxu0
    %766 = vmatprep.mubr.bf16.mxu0 %v218
    %767 = vmatmul.mubr.bf16.gmra.mrb[0].mxu0 %v217
    %v768 = vpop.f32.mrb[0].mxu0
    %v769 = vadd.f32 %v348, %v768
    %v770 = vpop.f32.mrb[0].mxu0
    %v771 = vpop.f32.mrb[0].mxu0
    %v772 = vadd.f32 %v348, %v771
    %v773 = vpop.f32.mrb[0].mxu0
    %774 = vmatprep.mubr.bf16.mxu0 %v225
    %775 = vmatmul.mubr.bf16.gmra.mrb[0].mxu0 %v224
    %v776 = vpop.f32.mrb[0].mxu0
    %v777 = vadd.f32 %v348, %v776
    %v778 = vpop.f32.mrb[0].mxu0
    %v779 = vpop.f32.mrb[0].mxu0
    %v780 = vadd.f32 %v348, %v779
    %v781 = vpop.f32.mrb[0].mxu0
    %782 = vdwg.mxu0
    %783 = vmatprep.subr.bf16.mxu0 0
    %784 = vmatpush1.bf16.msra.mxu0 %v590
    %785 = vmatprep.subr.bf16.mxu0 0
    %786 = vmatpush1.bf16.msra.mxu0 %v591
    %787 = vmatprep.subr.bf16.mxu0 0
    %788 = vmatpush1.bf16.msra.mxu0 %v592
    %789 = vmatprep.subr.bf16.mxu0 0
    %790 = vmatpush1.bf16.msra.mxu0 %v593
    %791 = vmatprep.subr.bf16.mxu0 0
    %792 = vmatpush1.bf16.msra.mxu0 %v594
    %793 = vmatprep.subr.bf16.mxu0 0
    %794 = vmatpush1.bf16.msra.mxu0 %v595
    %795 = vmatprep.subr.bf16.mxu0 0
    %796 = vmatpush1.bf16.msra.mxu0 %v596
    %797 = vmatprep.subr.bf16.mxu0 0
    %798 = vmatpush1.bf16.msra.mxu0 %v597
    %799 = vmatprep.subr.bf16.mxu0 0
    %800 = vmatpush1.bf16.msra.mxu0 %v598
    %801 = vmatprep.subr.bf16.mxu0 0
    %802 = vmatpush1.bf16.msra.mxu0 %v599
    %803 = vmatprep.subr.bf16.mxu0 0
    %804 = vmatpush1.bf16.msra.mxu0 %v600
    %805 = vmatprep.subr.bf16.mxu0 0
    %806 = vmatpush1.bf16.msra.mxu0 %v601
    %807 = vmatprep.subr.bf16.mxu0 0
    %808 = vmatpush1.bf16.msra.mxu0 %v602
    %809 = vmatprep.subr.bf16.mxu0 0
    %810 = vmatpush1.bf16.msra.mxu0 %v603
    %811 = vmatprep.subr.bf16.mxu0 0
    %812 = vmatpush1.bf16.msra.mxu0 %v604
    %813 = vmatprep.subr.bf16.mxu0 0
    %814 = vmatpush1.bf16.msra.mxu0 %v605
    %815 = vmatprep.mubr.bf16.mxu0 %v178
    %816 = vmatmul.mubr.bf16.gmra.mrb[0].mxu0 %v177
    %v817 = vpop.f32.mrb[0].mxu0
    %v818 = vadd.f32 %v721, %v817
    %v819 = vpop.f32.mrb[0].mxu0
    %v820 = vpop.f32.mrb[0].mxu0
    %v821 = vadd.f32 %v724, %v820
    %v822 = vpop.f32.mrb[0].mxu0
    %823 = vmatprep.mubr.bf16.mxu0 %v185
    %824 = vmatmul.mubr.bf16.gmra.mrb[0].mxu0 %v184
    %v825 = vpop.f32.mrb[0].mxu0
    %v826 = vadd.f32 %v729, %v825
    %v827 = vpop.f32.mrb[0].mxu0
    %v828 = vpop.f32.mrb[0].mxu0
    %v829 = vadd.f32 %v732, %v828
    %v830 = vpop.f32.mrb[0].mxu0
    %831 = vmatprep.mubr.bf16.mxu0 %v192
    %832 = vmatmul.mubr.bf16.gmra.mrb[0].mxu0 %v191
    %v833 = vpop.f32.mrb[0].mxu0
    %v834 = vadd.f32 %v737, %v833
    %v835 = vpop.f32.mrb[0].mxu0
    %v836 = vpop.f32.mrb[0].mxu0
    %v837 = vadd.f32 %v740, %v836
    %v838 = vpop.f32.mrb[0].mxu0
    %839 = vmatprep.mubr.bf16.mxu0 %v199
    %840 = vmatmul.mubr.bf16.gmra.mrb[0].mxu0 %v198
    %v841 = vpop.f32.mrb[0].mxu0
    %v842 = vadd.f32 %v745, %v841
    %v843 = vpop.f32.mrb[0].mxu0
    %v844 = vpop.f32.mrb[0].mxu0
    %v845 = vadd.f32 %v748, %v844
    %v846 = vpop.f32.mrb[0].mxu0
    %847 = vmatprep.mubr.bf16.mxu0 %v206
    %848 = vmatmul.mubr.bf16.gmra.mrb[0].mxu0 %v205
    %v849 = vpop.f32.mrb[0].mxu0
    %v850 = vadd.f32 %v753, %v849
    %v851 = vpop.f32.mrb[0].mxu0
    %v852 = vpop.f32.mrb[0].mxu0
    %v853 = vadd.f32 %v756, %v852
    %v854 = vpop.f32.mrb[0].mxu0
    %855 = vmatprep.mubr.bf16.mxu0 %v213
    %856 = vmatmul.mubr.bf16.gmra.mrb[0].mxu0 %v212
    %v857 = vpop.f32.mrb[0].mxu0
    %v858 = vadd.f32 %v761, %v857
    %v859 = vpop.f32.mrb[0].mxu0
    %v860 = vpop.f32.mrb[0].mxu0
    %v861 = vadd.f32 %v764, %v860
    %v862 = vpop.f32.mrb[0].mxu0
    %863 = vmatprep.mubr.bf16.mxu0 %v220
    %864 = vmatmul.mubr.bf16.gmra.mrb[0].mxu0 %v219
    %v865 = vpop.f32.mrb[0].mxu0
    %v866 = vadd.f32 %v769, %v865
    %v867 = vpop.f32.mrb[0].mxu0
    %v868 = vpop.f32.mrb[0].mxu0
    %v869 = vadd.f32 %v772, %v868
    %v870 = vpop.f32.mrb[0].mxu0
    %871 = vmatprep.mubr.bf16.mxu0 %v227
    %872 = vmatmul.mubr.bf16.gmra.mrb[0].mxu0 %v226
    %v873 = vpop.f32.mrb[0].mxu0
    %v874 = vadd.f32 %v777, %v873
    %v875 = vpop.f32.mrb[0].mxu0
    %v876 = vpop.f32.mrb[0].mxu0
    %v877 = vadd.f32 %v780, %v876
    %v878 = vpop.f32.mrb[0].mxu0
    %879 = vdwg.mxu0
    %880 = vmatprep.subr.bf16.mxu0 0
    %881 = vmatpush1.bf16.msra.mxu0 %v606
    %882 = vmatprep.subr.bf16.mxu0 0
    %883 = vmatpush1.bf16.msra.mxu0 %v607
    %884 = vmatprep.subr.bf16.mxu0 0
    %885 = vmatpush1.bf16.msra.mxu0 %v608
    %886 = vmatprep.subr.bf16.mxu0 0
    %887 = vmatpush1.bf16.msra.mxu0 %v609
    %888 = vmatprep.subr.bf16.mxu0 0
    %889 = vmatpush1.bf16.msra.mxu0 %v610
    %890 = vmatprep.subr.bf16.mxu0 0
    %891 = vmatpush1.bf16.msra.mxu0 %v611
    %892 = vmatprep.subr.bf16.mxu0 0
    %893 = vmatpush1.bf16.msra.mxu0 %v612
    %894 = vmatprep.subr.bf16.mxu0 0
    %895 = vmatpush1.bf16.msra.mxu0 %v613
    %896 = vmatprep.subr.bf16.mxu0 0
    %897 = vmatpush1.bf16.msra.mxu0 %v614
    %898 = vmatprep.subr.bf16.mxu0 0
    %899 = vmatpush1.bf16.msra.mxu0 %v615
    %900 = vmatprep.subr.bf16.mxu0 0
    %901 = vmatpush1.bf16.msra.mxu0 %v616
    %902 = vmatprep.subr.bf16.mxu0 0
    %903 = vmatpush1.bf16.msra.mxu0 %v617
    %904 = vmatprep.subr.bf16.mxu0 0
    %905 = vmatpush1.bf16.msra.mxu0 %v618
    %906 = vmatprep.subr.bf16.mxu0 0
    %907 = vmatpush1.bf16.msra.mxu0 %v619
    %908 = vmatprep.subr.bf16.mxu0 0
    %909 = vmatpush1.bf16.msra.mxu0 %v620
    %910 = vmatprep.subr.bf16.mxu0 0
    %911 = vmatpush1.bf16.msra.mxu0 %v621
    %912 = vmatprep.mubr.bf16.mxu0 %v180
    %913 = vmatmul.mubr.bf16.gmra.mrb[0].mxu0 %v179
    %v914 = vpop.f32.mrb[0].mxu0
    %v915 = vadd.f32 %v818, %v914
    %v916 = vpop.f32.mrb[0].mxu0
    %v917 = vpop.f32.mrb[0].mxu0
    %v918 = vadd.f32 %v821, %v917
    %v919 = vpop.f32.mrb[0].mxu0
    %920 = vmatprep.mubr.bf16.mxu0 %v187
    %921 = vmatmul.mubr.bf16.gmra.mrb[0].mxu0 %v186
    %v922 = vpop.f32.mrb[0].mxu0
    %v923 = vadd.f32 %v826, %v922
    %v924 = vpop.f32.mrb[0].mxu0
    %v925 = vpop.f32.mrb[0].mxu0
    %v926 = vadd.f32 %v829, %v925
    %v927 = vpop.f32.mrb[0].mxu0
    %928 = vmatprep.mubr.bf16.mxu0 %v194
    %929 = vmatmul.mubr.bf16.gmra.mrb[0].mxu0 %v193
    %v930 = vpop.f32.mrb[0].mxu0
    %v931 = vadd.f32 %v834, %v930
    %v932 = vpop.f32.mrb[0].mxu0
    %v933 = vpop.f32.mrb[0].mxu0
    %v934 = vadd.f32 %v837, %v933
    %v935 = vpop.f32.mrb[0].mxu0
    %936 = vmatprep.mubr.bf16.mxu0 %v201
    %937 = vmatmul.mubr.bf16.gmra.mrb[0].mxu0 %v200
    %v938 = vpop.f32.mrb[0].mxu0
    %v939 = vadd.f32 %v842, %v938
    %v940 = vpop.f32.mrb[0].mxu0
    %v941 = vpop.f32.mrb[0].mxu0
    %v942 = vadd.f32 %v845, %v941
    %v943 = vpop.f32.mrb[0].mxu0
    %944 = vmatprep.mubr.bf16.mxu0 %v208
    %945 = vmatmul.mubr.bf16.gmra.mrb[0].mxu0 %v207
    %v946 = vpop.f32.mrb[0].mxu0
    %v947 = vadd.f32 %v850, %v946
    %v948 = vpop.f32.mrb[0].mxu0
    %v949 = vpop.f32.mrb[0].mxu0
    %v950 = vadd.f32 %v853, %v949
    %v951 = vpop.f32.mrb[0].mxu0
    %952 = vmatprep.mubr.bf16.mxu0 %v215
    %953 = vmatmul.mubr.bf16.gmra.mrb[0].mxu0 %v214
    %v954 = vpop.f32.mrb[0].mxu0
    %v955 = vadd.f32 %v858, %v954
    %v956 = vpop.f32.mrb[0].mxu0
    %v957 = vpop.f32.mrb[0].mxu0
    %v958 = vadd.f32 %v861, %v957
    %v959 = vpop.f32.mrb[0].mxu0
    %960 = vmatprep.mubr.bf16.mxu0 %v222
    %961 = vmatmul.mubr.bf16.gmra.mrb[0].mxu0 %v221
    %v962 = vpop.f32.mrb[0].mxu0
    %v963 = vadd.f32 %v866, %v962
    %v964 = vpop.f32.mrb[0].mxu0
    %v965 = vpop.f32.mrb[0].mxu0
    %v966 = vadd.f32 %v869, %v965
    %v967 = vpop.f32.mrb[0].mxu0
    %968 = vmatprep.mubr.bf16.mxu0 %v229
    %969 = vmatmul.mubr.bf16.gmra.mrb[0].mxu0 %v228
    %v970 = vpop.f32.mrb[0].mxu0
    %v971 = vadd.f32 %v874, %v970
    %v972 = vpop.f32.mrb[0].mxu0
    %v973 = vpop.f32.mrb[0].mxu0
    %v974 = vadd.f32 %v877, %v973
    %v975 = vpop.f32.mrb[0].mxu0
    %976 = vdwg.mxu0
    %977 = vmatprep.subr.bf16.mxu0 0
    %978 = vmatpush1.bf16.msra.mxu0 %v622
    %979 = vmatprep.subr.bf16.mxu0 0
    %980 = vmatpush1.bf16.msra.mxu0 %v623
    %981 = vmatprep.subr.bf16.mxu0 0
    %982 = vmatpush1.bf16.msra.mxu0 %v624
    %983 = vmatprep.subr.bf16.mxu0 0
    %984 = vmatpush1.bf16.msra.mxu0 %v625
    %985 = vmatprep.subr.bf16.mxu0 0
    %986 = vmatpush1.bf16.msra.mxu0 %v626
    %987 = vmatprep.subr.bf16.mxu0 0
    %988 = vmatpush1.bf16.msra.mxu0 %v627
    %989 = vmatprep.subr.bf16.mxu0 0
    %990 = vmatpush1.bf16.msra.mxu0 %v628
    %991 = vmatprep.subr.bf16.mxu0 0
    %992 = vmatpush1.bf16.msra.mxu0 %v629
    %993 = vmatprep.subr.bf16.mxu0 0
    %994 = vmatpush1.bf16.msra.mxu0 0
    %995 = vmatprep.subr.bf16.mxu0 0
    %996 = vmatpush1.bf16.msra.mxu0 0
    %997 = vmatprep.subr.bf16.mxu0 0
    %998 = vmatpush1.bf16.msra.mxu0 0
    %999 = vmatprep.subr.bf16.mxu0 0
    %1000 = vmatpush1.bf16.msra.mxu0 0
    %1001 = vmatprep.subr.bf16.mxu0 0
    %1002 = vmatpush1.bf16.msra.mxu0 0
    %1003 = vmatprep.subr.bf16.mxu0 0
    %1004 = vmatpush1.bf16.msra.mxu0 0
    %1005 = vmatprep.subr.bf16.mxu0 0
    %1006 = vmatpush1.bf16.msra.mxu0 0
    %1007 = vmatprep.subr.bf16.mxu0 0
    %1008 = vmatpush1.bf16.msra.mxu0 0
    %1009 = vmatprep.mubr.bf16.mxu0 0
    %1010 = vmatmul.mubr.bf16.gmra.mrb[0].mxu0 %v181
    %v1011 = vpop.f32.mrb[0].mxu0
    %v1012 = vadd.f32 %v915, %v1011
    %v1013 = vpop.f32.mrb[0].mxu0
    %v1014 = vpop.f32.mrb[0].mxu0
    %v1015 = vadd.f32 %v918, %v1014
    %v1016 = vpop.f32.mrb[0].mxu0
    %1017 = vmatprep.mubr.bf16.mxu0 0
    %1018 = vmatmul.mubr.bf16.gmra.mrb[0].mxu0 %v188
    %v1019 = vpop.f32.mrb[0].mxu0
    %v1020 = vadd.f32 %v923, %v1019
    %v1021 = vpop.f32.mrb[0].mxu0
    %v1022 = vpop.f32.mrb[0].mxu0
    %v1023 = vadd.f32 %v926, %v1022
    %v1024 = vpop.f32.mrb[0].mxu0
    %1025 = vmatprep.mubr.bf16.mxu0 0
    %1026 = vmatmul.mubr.bf16.gmra.mrb[0].mxu0 %v195
    %v1027 = vpop.f32.mrb[0].mxu0
    %v1028 = vadd.f32 %v931, %v1027
    %v1029 = vpop.f32.mrb[0].mxu0
    %v1030 = vpop.f32.mrb[0].mxu0
    %v1031 = vadd.f32 %v934, %v1030
    %v1032 = vpop.f32.mrb[0].mxu0
    %1033 = vmatprep.mubr.bf16.mxu0 0
    %1034 = vmatmul.mubr.bf16.gmra.mrb[0].mxu0 %v202
    %v1035 = vpop.f32.mrb[0].mxu0
    %v1036 = vadd.f32 %v939, %v1035
    %v1037 = vpop.f32.mrb[0].mxu0
    %v1038 = vpop.f32.mrb[0].mxu0
    %v1039 = vadd.f32 %v942, %v1038
    %v1040 = vpop.f32.mrb[0].mxu0
    %1041 = vmatprep.mubr.bf16.mxu0 0
    %1042 = vmatmul.mubr.bf16.gmra.mrb[0].mxu0 %v209
    %v1043 = vpop.f32.mrb[0].mxu0
    %v1044 = vadd.f32 %v947, %v1043
    %v1045 = vpop.f32.mrb[0].mxu0
    %v1046 = vpop.f32.mrb[0].mxu0
    %v1047 = vadd.f32 %v950, %v1046
    %v1048 = vpop.f32.mrb[0].mxu0
    %1049 = vmatprep.mubr.bf16.mxu0 0
    %1050 = vmatmul.mubr.bf16.gmra.mrb[0].mxu0 %v216
    %v1051 = vpop.f32.mrb[0].mxu0
    %v1052 = vadd.f32 %v955, %v1051
    %v1053 = vpop.f32.mrb[0].mxu0
    %v1054 = vpop.f32.mrb[0].mxu0
    %v1055 = vadd.f32 %v958, %v1054
    %v1056 = vpop.f32.mrb[0].mxu0
    %1057 = vmatprep.mubr.bf16.mxu0 0
    %1058 = vmatmul.mubr.bf16.gmra.mrb[0].mxu0 %v223
    %v1059 = vpop.f32.mrb[0].mxu0
    %v1060 = vadd.f32 %v963, %v1059
    %v1061 = vpop.f32.mrb[0].mxu0
    %v1062 = vpop.f32.mrb[0].mxu0
    %v1063 = vadd.f32 %v966, %v1062
    %v1064 = vpop.f32.mrb[0].mxu0
    %1065 = vmatprep.mubr.bf16.mxu0 0
    %1066 = vmatmul.mubr.bf16.gmra.mrb[0].mxu0 %v230
    %v1067 = vpop.f32.mrb[0].mxu0
    %v1068 = vadd.f32 %v971, %v1067
    %v1069 = vpop.f32.mrb[0].mxu0
    %v1070 = vpop.f32.mrb[0].mxu0
    %v1071 = vadd.f32 %v974, %v1070
    %v1072 = vpop.f32.mrb[0].mxu0
    %1073 = vdwg.mxu0
    %v1074 = vmax.f32 %v1012, 0.0
    %v1075 = vmax.f32 %v1015, 0.0
    %v1076 = vmax.f32 %v1020, 0.0
    %v1077 = vmax.f32 %v1023, 0.0
    %v1078 = vmax.f32 %v1028, 0.0
    %v1079 = vmax.f32 %v1031, 0.0
    %v1080 = vmax.f32 %v1036, 0.0
    %v1081 = vmax.f32 %v1039, 0.0
    %v1082 = vmax.f32 %v1044, 0.0
    %v1083 = vmax.f32 %v1047, 0.0
    %v1084 = vmax.f32 %v1052, 0.0
    %v1085 = vmax.f32 %v1055, 0.0
    %v1086 = vmax.f32 %v1060, 0.0
    %v1087 = vmax.f32 %v1063, 0.0
    %v1088 = vmax.f32 %v1068, 0.0
    %v1089 = vmax.f32 %v1071, 0.0
    %v1090 = vpack.c.bf16 %v1075, %v1074
    %v1091 = vpack.c.bf16 %v1077, %v1076
    %v1092 = vpack.c.bf16 %v1079, %v1078
    %v1093 = vpack.c.bf16 %v1081, %v1080
    %v1094 = vpack.c.bf16 %v1083, %v1082
    %v1095 = vpack.c.bf16 %v1085, %v1084
    %v1096 = vpack.c.bf16 %v1087, %v1086
    %v1097 = vpack.c.bf16 %v1089, %v1088
    %v1098 = vld [vmem:[#allocation7] sm:$0xff]
    %v1099 = vld [vmem:[#allocation7 + $0x8] sm:$0xff]
    %v1100 = vld [vmem:[#allocation7 + $0x10] sm:$0xf]
    %v1101 = vld [vmem:[#allocation7 + $0x14] sm:$0xff]
    %v1102 = vld [vmem:[#allocation7 + $0x1c] sm:$0xff]
    %v1103 = vld [vmem:[#allocation7 + $0x24] sm:$0xf]
    %v1104 = vld [vmem:[#allocation7 + $0x28] sm:$0xff]
    %v1105 = vld [vmem:[#allocation7 + $0x30] sm:$0xff]
    %v1106 = vld [vmem:[#allocation7 + $0x38] sm:$0xf]
    %v1107 = vld [vmem:[#allocation7 + $0x3c] sm:$0xff]
    %v1108 = vld [vmem:[#allocation7 + $0x44] sm:$0xff]
    %v1109 = vld [vmem:[#allocation7 + $0x4c] sm:$0xf]
    %v1110 = vld [vmem:[#allocation7 + $0x50] sm:$0xff]
    %v1111 = vld [vmem:[#allocation7 + $0x58] sm:$0xff]
    %v1112 = vld [vmem:[#allocation7 + $0x60] sm:$0xf]
    %v1113 = vld [vmem:[#allocation7 + $0x64] sm:$0xff]
    %v1114 = vld [vmem:[#allocation7 + $0x6c] sm:$0xff]
    %v1115 = vld [vmem:[#allocation7 + $0x74] sm:$0xf]
    %v1116 = vld [vmem:[#allocation7 + $0x78] sm:$0xff]
    %v1117 = vld [vmem:[#allocation7 + $0x80] sm:$0xff]
    %v1118 = vld [vmem:[#allocation7 + $0x88] sm:$0xf]
    %v1119 = vld [vmem:[#allocation7 + $0x8c] sm:$0xff]
    %v1120 = vld [vmem:[#allocation7 + $0x94] sm:$0xff]
    %v1121 = vld [vmem:[#allocation7 + $0x9c] sm:$0xf]
    %v1122 = vld [vmem:[#allocation7 + $0xa0] sm:$0xff]
    %v1123 = vld [vmem:[#allocation7 + $0xa8] sm:$0xff]
    %v1124 = vld [vmem:[#allocation7 + $0xb0] sm:$0xf]
    %v1125 = vld [vmem:[#allocation7 + $0xb4] sm:$0xff]
    %v1126 = vld [vmem:[#allocation7 + $0xbc] sm:$0xff]
    %v1127 = vld [vmem:[#allocation7 + $0xc4] sm:$0xf]
    %v1128 = vld [vmem:[#allocation7 + $0xc8] sm:$0xff]
    %v1129 = vld [vmem:[#allocation7 + $0xd0] sm:$0xff]
    %v1130 = vld [vmem:[#allocation7 + $0xd8] sm:$0xf]
    %v1131 = vld [vmem:[#allocation7 + $0xdc] sm:$0xff]
    %v1132 = vld [vmem:[#allocation7 + $0xe4] sm:$0xff]
    %v1133 = vld [vmem:[#allocation7 + $0xec] sm:$0xf]
    %v1134 = vld [vmem:[#allocation7 + $0xf0] sm:$0xff]
    %v1135 = vld [vmem:[#allocation7 + $0xf8] sm:$0xff]
    %v1136 = vld [vmem:[#allocation7 + $0x100] sm:$0xf]
    %v1137 = vld [vmem:[#allocation7 + $0x104] sm:$0xff]
    %v1138 = vld [vmem:[#allocation7 + $0x10c] sm:$0xff]
    %v1139 = vld [vmem:[#allocation7 + $0x114] sm:$0xf]
    %v1140 = vld [vmem:[#allocation7 + $0x118] sm:$0xff]
    %v1141 = vld [vmem:[#allocation7 + $0x120] sm:$0xff]
    %v1142 = vld [vmem:[#allocation7 + $0x128] sm:$0xf]
    %v1143 = vld [vmem:[#allocation7 + $0x12c] sm:$0xff]
    %v1144 = vld [vmem:[#allocation7 + $0x134] sm:$0xff]
    %v1145 = vld [vmem:[#allocation7 + $0x13c] sm:$0xf]
    %v1146 = vld [vmem:[%s4] sm:$0x1f]
    %v1148 = vlaneseq
    %v1149 = vshrl.u32 %v1148, 7
    %v1150 = vsub.s32 0, %v1149
    %v1151 = vrot.slane %v1146, %v1150
    %v1152 = vlaneseq
    %v1153 = vshrl.u32 %v1152, 7
    %v1154 = vsub.s32 1, %v1153
    %v1155 = vrot.slane %v1146, %v1154
    %v1156 = vlaneseq
    %v1157 = vshrl.u32 %v1156, 7
    %v1158 = vsub.s32 2, %v1157
    %v1159 = vrot.slane %v1146, %v1158
    %v1160 = vlaneseq
    %v1161 = vshrl.u32 %v1160, 7
    %v1162 = vsub.s32 3, %v1161
    %v1163 = vrot.slane %v1146, %v1162
    %v1164 = vlaneseq
    %v1165 = vshrl.u32 %v1164, 7
    %v1166 = vsub.s32 4, %v1165
    %v1167 = vrot.slane %v1146, %v1166
    %v1221 = vunpack.c.l.b16 %v1098
    %v1222 = vunpack.c.h.b16 %v1098
    %v1223 = vunpack.c.l.b16 %v1099
    %v1224 = vunpack.c.h.b16 %v1099
    %v1225 = vunpack.c.l.b16 %v1100
    %v1226 = vunpack.c.l.b16 %v1101
    %v1227 = vunpack.c.h.b16 %v1101
    %v1228 = vunpack.c.l.b16 %v1102
    %v1229 = vunpack.c.h.b16 %v1102
    %v1230 = vunpack.c.l.b16 %v1103
    %v1231 = vunpack.c.l.b16 %v1104
    %v1232 = vunpack.c.h.b16 %v1104
    %v1233 = vunpack.c.l.b16 %v1105
    %v1234 = vunpack.c.h.b16 %v1105
    %v1235 = vunpack.c.l.b16 %v1106
    %v1236 = vunpack.c.l.b16 %v1107
    %v1237 = vunpack.c.h.b16 %v1107
    %v1238 = vunpack.c.l.b16 %v1108
    %v1239 = vunpack.c.h.b16 %v1108
    %v1240 = vunpack.c.l.b16 %v1109
    %v1241 = vunpack.c.l.b16 %v1110
    %v1242 = vunpack.c.h.b16 %v1110
    %v1243 = vunpack.c.l.b16 %v1111
    %v1244 = vunpack.c.h.b16 %v1111
    %v1245 = vunpack.c.l.b16 %v1112
    %v1246 = vunpack.c.l.b16 %v1113
    %v1247 = vunpack.c.h.b16 %v1113
    %v1248 = vunpack.c.l.b16 %v1114
    %v1249 = vunpack.c.h.b16 %v1114
    %v1250 = vunpack.c.l.b16 %v1115
    %v1251 = vunpack.c.l.b16 %v1116
    %v1252 = vunpack.c.h.b16 %v1116
    %v1253 = vunpack.c.l.b16 %v1117
    %v1254 = vunpack.c.h.b16 %v1117
    %v1255 = vunpack.c.l.b16 %v1118
    %v1256 = vunpack.c.l.b16 %v1119
    %v1257 = vunpack.c.h.b16 %v1119
    %v1258 = vunpack.c.l.b16 %v1120
    %v1259 = vunpack.c.h.b16 %v1120
    %v1260 = vunpack.c.l.b16 %v1121
    %v1261 = vunpack.c.l.b16 %v1122
    %v1262 = vunpack.c.h.b16 %v1122
    %v1263 = vunpack.c.l.b16 %v1123
    %v1264 = vunpack.c.h.b16 %v1123
    %v1265 = vunpack.c.l.b16 %v1124
    %v1266 = vunpack.c.l.b16 %v1125
    %v1267 = vunpack.c.h.b16 %v1125
    %v1268 = vunpack.c.l.b16 %v1126
    %v1269 = vunpack.c.h.b16 %v1126
    %v1270 = vunpack.c.l.b16 %v1127
    %v1271 = vunpack.c.l.b16 %v1128
    %v1272 = vunpack.c.h.b16 %v1128
    %v1273 = vunpack.c.l.b16 %v1129
    %v1274 = vunpack.c.h.b16 %v1129
    %v1275 = vunpack.c.l.b16 %v1130
    %v1276 = vunpack.c.l.b16 %v1131
    %v1277 = vunpack.c.h.b16 %v1131
    %v1278 = vunpack.c.l.b16 %v1132
    %v1279 = vunpack.c.h.b16 %v1132
    %v1280 = vunpack.c.l.b16 %v1133
    %v1281 = vunpack.c.l.b16 %v1134
    %v1282 = vunpack.c.h.b16 %v1134
    %v1283 = vunpack.c.l.b16 %v1135
    %v1284 = vunpack.c.h.b16 %v1135
    %v1285 = vunpack.c.l.b16 %v1136
    %v1286 = vunpack.c.l.b16 %v1137
    %v1287 = vunpack.c.h.b16 %v1137
    %v1288 = vunpack.c.l.b16 %v1138
    %v1289 = vunpack.c.h.b16 %v1138
    %v1290 = vunpack.c.l.b16 %v1139
    %v1291 = vunpack.c.l.b16 %v1140
    %v1292 = vunpack.c.h.b16 %v1140
    %v1293 = vunpack.c.l.b16 %v1141
    %v1294 = vunpack.c.h.b16 %v1141
    %v1295 = vunpack.c.l.b16 %v1142
    %v1296 = vunpack.c.l.b16 %v1143
    %v1297 = vunpack.c.h.b16 %v1143
    %v1298 = vunpack.c.l.b16 %v1144
    %v1299 = vunpack.c.h.b16 %v1144
    %v1300 = vunpack.c.l.b16 %v1145
    %v1301 = vpack.c.b16 %v1226, %v1221
    %v1302 = vpack.c.b16 %v1227, %v1222
    %v1303 = vpack.c.b16 %v1228, %v1223
    %v1304 = vpack.c.b16 %v1229, %v1224
    %v1305 = vpack.c.b16 %v1230, %v1225
    %v1306 = vpack.c.b16 %v1236, %v1231
    %v1307 = vpack.c.b16 %v1237, %v1232
    %v1308 = vpack.c.b16 %v1238, %v1233
    %v1309 = vpack.c.b16 %v1239, %v1234
    %v1310 = vpack.c.b16 %v1240, %v1235
    %v1311 = vpack.c.b16 %v1246, %v1241
    %v1312 = vpack.c.b16 %v1247, %v1242
    %v1313 = vpack.c.b16 %v1248, %v1243
    %v1314 = vpack.c.b16 %v1249, %v1244
    %v1315 = vpack.c.b16 %v1250, %v1245
    %v1316 = vpack.c.b16 %v1256, %v1251
    %v1317 = vpack.c.b16 %v1257, %v1252
    %v1318 = vpack.c.b16 %v1258, %v1253
    %v1319 = vpack.c.b16 %v1259, %v1254
    %v1320 = vpack.c.b16 %v1260, %v1255
    %v1321 = vpack.c.b16 %v1266, %v1261
    %v1322 = vpack.c.b16 %v1267, %v1262
    %v1323 = vpack.c.b16 %v1268, %v1263
    %v1324 = vpack.c.b16 %v1269, %v1264
    %v1325 = vpack.c.b16 %v1270, %v1265
    %v1326 = vpack.c.b16 %v1276, %v1271
    %v1327 = vpack.c.b16 %v1277, %v1272
    %v1328 = vpack.c.b16 %v1278, %v1273
    %v1329 = vpack.c.b16 %v1279, %v1274
    %v1330 = vpack.c.b16 %v1280, %v1275
    %v1331 = vpack.c.b16 %v1286, %v1281
    %v1332 = vpack.c.b16 %v1287, %v1282
    %v1333 = vpack.c.b16 %v1288, %v1283
    %v1334 = vpack.c.b16 %v1289, %v1284
    %v1335 = vpack.c.b16 %v1290, %v1285
    %v1336 = vpack.c.b16 %v1296, %v1291
    %v1337 = vpack.c.b16 %v1297, %v1292
    %v1338 = vpack.c.b16 %v1298, %v1293
    %v1339 = vpack.c.b16 %v1299, %v1294
    %v1340 = vpack.c.b16 %v1300, %v1295
    %1381 = vmatprep.subr.bf16.mxu0 %v1302
    %1382 = vmatpush1.bf16.msra.mxu0 %v1301
    %1383 = vmatprep.subr.bf16.mxu0 %v1307
    %1384 = vmatpush1.bf16.msra.mxu0 %v1306
    %1385 = vmatprep.subr.bf16.mxu0 %v1312
    %1386 = vmatpush1.bf16.msra.mxu0 %v1311
    %1387 = vmatprep.subr.bf16.mxu0 %v1317
    %1388 = vmatpush1.bf16.msra.mxu0 %v1316
    %1389 = vmatprep.subr.bf16.mxu0 %v1322
    %1390 = vmatpush1.bf16.msra.mxu0 %v1321
    %1391 = vmatprep.subr.bf16.mxu0 %v1327
    %1392 = vmatpush1.bf16.msra.mxu0 %v1326
    %1393 = vmatprep.subr.bf16.mxu0 %v1332
    %1394 = vmatpush1.bf16.msra.mxu0 %v1331
    %1395 = vmatprep.subr.bf16.mxu0 %v1337
    %1396 = vmatpush1.bf16.msra.mxu0 %v1336
    %1397 = vmatprep.subr.bf16.mxu0 0
    %1398 = vmatpush1.bf16.msra.mxu0 0
    %1399 = vmatprep.subr.bf16.mxu0 0
    %1400 = vmatpush1.bf16.msra.mxu0 0
    %1401 = vmatprep.subr.bf16.mxu0 0
    %1402 = vmatpush1.bf16.msra.mxu0 0
    %1403 = vmatprep.subr.bf16.mxu0 0
    %1404 = vmatpush1.bf16.msra.mxu0 0
    %1405 = vmatprep.subr.bf16.mxu0 0
    %1406 = vmatpush1.bf16.msra.mxu0 0
    %1407 = vmatprep.subr.bf16.mxu0 0
    %1408 = vmatpush1.bf16.msra.mxu0 0
    %1409 = vmatprep.subr.bf16.mxu0 0
    %1410 = vmatpush1.bf16.msra.mxu0 0
    %1411 = vmatprep.subr.bf16.mxu0 0
    %1412 = vmatpush1.bf16.msra.mxu0 0
    %1413 = vmatprep.mubr.bf16.mxu0 0
    %1414 = vmatmul.mubr.bf16.gmra.mrb[0].mxu0 %v1090
    %v1415 = vpop.f32.mrb[0].mxu0
    %v1416 = vadd.f32 %v1151, %v1415
    %v1417 = vpop.f32.mrb[0].mxu0
    %v1418 = vadd.f32 %v1155, %v1417
    %v1419 = vpop.f32.mrb[0].mxu0
    %v1420 = vadd.f32 %v1151, %v1419
    %v1421 = vpop.f32.mrb[0].mxu0
    %v1422 = vadd.f32 %v1155, %v1421
    %1423 = vmatprep.mubr.bf16.mxu0 0
    %1424 = vmatmul.mubr.bf16.gmra.mrb[0].mxu0 %v1091
    %v1425 = vpop.f32.mrb[0].mxu0
    %v1426 = vadd.f32 %v1151, %v1425
    %v1427 = vpop.f32.mrb[0].mxu0
    %v1428 = vadd.f32 %v1155, %v1427
    %v1429 = vpop.f32.mrb[0].mxu0
    %v1430 = vadd.f32 %v1151, %v1429
    %v1431 = vpop.f32.mrb[0].mxu0
    %v1432 = vadd.f32 %v1155, %v1431
    %1433 = vmatprep.mubr.bf16.mxu0 0
    %1434 = vmatmul.mubr.bf16.gmra.mrb[0].mxu0 %v1092
    %v1435 = vpop.f32.mrb[0].mxu0
    %v1436 = vadd.f32 %v1151, %v1435
    %v1437 = vpop.f32.mrb[0].mxu0
    %v1438 = vadd.f32 %v1155, %v1437
    %v1439 = vpop.f32.mrb[0].mxu0
    %v1440 = vadd.f32 %v1151, %v1439
    %v1441 = vpop.f32.mrb[0].mxu0
    %v1442 = vadd.f32 %v1155, %v1441
    %1443 = vmatprep.mubr.bf16.mxu0 0
    %1444 = vmatmul.mubr.bf16.gmra.mrb[0].mxu0 %v1093
    %v1445 = vpop.f32.mrb[0].mxu0
    %v1446 = vadd.f32 %v1151, %v1445
    %v1447 = vpop.f32.mrb[0].mxu0
    %v1448 = vadd.f32 %v1155, %v1447
    %v1449 = vpop.f32.mrb[0].mxu0
    %v1450 = vadd.f32 %v1151, %v1449
    %v1451 = vpop.f32.mrb[0].mxu0
    %v1452 = vadd.f32 %v1155, %v1451
    %1453 = vmatprep.mubr.bf16.mxu0 0
    %1454 = vmatmul.mubr.bf16.gmra.mrb[0].mxu0 %v1094
    %v1455 = vpop.f32.mrb[0].mxu0
    %v1456 = vadd.f32 %v1151, %v1455
    %v1457 = vpop.f32.mrb[0].mxu0
    %v1458 = vadd.f32 %v1155, %v1457
    %v1459 = vpop.f32.mrb[0].mxu0
    %v1460 = vadd.f32 %v1151, %v1459
    %v1461 = vpop.f32.mrb[0].mxu0
    %v1462 = vadd.f32 %v1155, %v1461
    %1463 = vmatprep.mubr.bf16.mxu0 0
    %1464 = vmatmul.mubr.bf16.gmra.mrb[0].mxu0 %v1095
    %v1465 = vpop.f32.mrb[0].mxu0
    %v1466 = vadd.f32 %v1151, %v1465
    %v1467 = vpop.f32.mrb[0].mxu0
    %v1468 = vadd.f32 %v1155, %v1467
    %v1469 = vpop.f32.mrb[0].mxu0
    %v1470 = vadd.f32 %v1151, %v1469
    %v1471 = vpop.f32.mrb[0].mxu0
    %v1472 = vadd.f32 %v1155, %v1471
    %1473 = vmatprep.mubr.bf16.mxu0 0
    %1474 = vmatmul.mubr.bf16.gmra.mrb[0].mxu0 %v1096
    %v1475 = vpop.f32.mrb[0].mxu0
    %v1476 = vadd.f32 %v1151, %v1475
    %v1477 = vpop.f32.mrb[0].mxu0
    %v1478 = vadd.f32 %v1155, %v1477
    %v1479 = vpop.f32.mrb[0].mxu0
    %v1480 = vadd.f32 %v1151, %v1479
    %v1481 = vpop.f32.mrb[0].mxu0
    %v1482 = vadd.f32 %v1155, %v1481
    %1483 = vmatprep.mubr.bf16.mxu0 0
    %1484 = vmatmul.mubr.bf16.gmra.mrb[0].mxu0 %v1097
    %v1485 = vpop.f32.mrb[0].mxu0
    %v1486 = vadd.f32 %v1151, %v1485
    %v1487 = vpop.f32.mrb[0].mxu0
    %v1488 = vadd.f32 %v1155, %v1487
    %v1489 = vpop.f32.mrb[0].mxu0
    %v1490 = vadd.f32 %v1151, %v1489
    %v1491 = vpop.f32.mrb[0].mxu0
    %v1492 = vadd.f32 %v1155, %v1491
    %1493 = vdwg.mxu0
    %1494 = vmatprep.subr.bf16.mxu0 %v1304
    %1495 = vmatpush1.bf16.msra.mxu0 %v1303
    %1496 = vmatprep.subr.bf16.mxu0 %v1309
    %1497 = vmatpush1.bf16.msra.mxu0 %v1308
    %1498 = vmatprep.subr.bf16.mxu0 %v1314
    %1499 = vmatpush1.bf16.msra.mxu0 %v1313
    %1500 = vmatprep.subr.bf16.mxu0 %v1319
    %1501 = vmatpush1.bf16.msra.mxu0 %v1318
    %1502 = vmatprep.subr.bf16.mxu0 %v1324
    %1503 = vmatpush1.bf16.msra.mxu0 %v1323
    %1504 = vmatprep.subr.bf16.mxu0 %v1329
    %1505 = vmatpush1.bf16.msra.mxu0 %v1328
    %1506 = vmatprep.subr.bf16.mxu0 %v1334
    %1507 = vmatpush1.bf16.msra.mxu0 %v1333
    %1508 = vmatprep.subr.bf16.mxu0 %v1339
    %1509 = vmatpush1.bf16.msra.mxu0 %v1338
    %1510 = vmatprep.subr.bf16.mxu0 0
    %1511 = vmatpush1.bf16.msra.mxu0 0
    %1512 = vmatprep.subr.bf16.mxu0 0
    %1513 = vmatpush1.bf16.msra.mxu0 0
    %1514 = vmatprep.subr.bf16.mxu0 0
    %1515 = vmatpush1.bf16.msra.mxu0 0
    %1516 = vmatprep.subr.bf16.mxu0 0
    %1517 = vmatpush1.bf16.msra.mxu0 0
    %1518 = vmatprep.subr.bf16.mxu0 0
    %1519 = vmatpush1.bf16.msra.mxu0 0
    %1520 = vmatprep.subr.bf16.mxu0 0
    %1521 = vmatpush1.bf16.msra.mxu0 0
    %1522 = vmatprep.subr.bf16.mxu0 0
    %1523 = vmatpush1.bf16.msra.mxu0 0
    %1524 = vmatprep.subr.bf16.mxu0 0
    %1525 = vmatpush1.bf16.msra.mxu0 0
    %1526 = vmatprep.mubr.bf16.mxu0 0
    %1527 = vmatmul.mubr.bf16.gmra.mrb[0].mxu0 %v1090
    %v1528 = vpop.f32.mrb[0].mxu0
    %v1529 = vadd.f32 %v1159, %v1528
    %v1530 = vpop.f32.mrb[0].mxu0
    %v1531 = vadd.f32 %v1163, %v1530
    %v1532 = vpop.f32.mrb[0].mxu0
    %v1533 = vadd.f32 %v1159, %v1532
    %v1534 = vpop.f32.mrb[0].mxu0
    %v1535 = vadd.f32 %v1163, %v1534
    %1536 = vmatprep.mubr.bf16.mxu0 0
    %1537 = vmatmul.mubr.bf16.gmra.mrb[0].mxu0 %v1091
    %v1538 = vpop.f32.mrb[0].mxu0
    %v1539 = vadd.f32 %v1159, %v1538
    %v1540 = vpop.f32.mrb[0].mxu0
    %v1541 = vadd.f32 %v1163, %v1540
    %v1542 = vpop.f32.mrb[0].mxu0
    %v1543 = vadd.f32 %v1159, %v1542
    %v1544 = vpop.f32.mrb[0].mxu0
    %v1545 = vadd.f32 %v1163, %v1544
    %1546 = vmatprep.mubr.bf16.mxu0 0
    %1547 = vmatmul.mubr.bf16.gmra.mrb[0].mxu0 %v1092
    %v1548 = vpop.f32.mrb[0].mxu0
    %v1549 = vadd.f32 %v1159, %v1548
    %v1550 = vpop.f32.mrb[0].mxu0
    %v1551 = vadd.f32 %v1163, %v1550
    %v1552 = vpop.f32.mrb[0].mxu0
    %v1553 = vadd.f32 %v1159, %v1552
    %v1554 = vpop.f32.mrb[0].mxu0
    %v1555 = vadd.f32 %v1163, %v1554
    %1556 = vmatprep.mubr.bf16.mxu0 0
    %1557 = vmatmul.mubr.bf16.gmra.mrb[0].mxu0 %v1093
    %v1558 = vpop.f32.mrb[0].mxu0
    %v1559 = vadd.f32 %v1159, %v1558
    %v1560 = vpop.f32.mrb[0].mxu0
    %v1561 = vadd.f32 %v1163, %v1560
    %v1562 = vpop.f32.mrb[0].mxu0
    %v1563 = vadd.f32 %v1159, %v1562
    %v1564 = vpop.f32.mrb[0].mxu0
    %v1565 = vadd.f32 %v1163, %v1564
    %1566 = vmatprep.mubr.bf16.mxu0 0
    %1567 = vmatmul.mubr.bf16.gmra.mrb[0].mxu0 %v1094
    %v1568 = vpop.f32.mrb[0].mxu0
    %v1569 = vadd.f32 %v1159, %v1568
    %v1570 = vpop.f32.mrb[0].mxu0
    %v1571 = vadd.f32 %v1163, %v1570
    %v1572 = vpop.f32.mrb[0].mxu0
    %v1573 = vadd.f32 %v1159, %v1572
    %v1574 = vpop.f32.mrb[0].mxu0
    %v1575 = vadd.f32 %v1163, %v1574
    %1576 = vmatprep.mubr.bf16.mxu0 0
    %1577 = vmatmul.mubr.bf16.gmra.mrb[0].mxu0 %v1095
    %v1578 = vpop.f32.mrb[0].mxu0
    %v1579 = vadd.f32 %v1159, %v1578
    %v1580 = vpop.f32.mrb[0].mxu0
    %v1581 = vadd.f32 %v1163, %v1580
    %v1582 = vpop.f32.mrb[0].mxu0
    %v1583 = vadd.f32 %v1159, %v1582
    %v1584 = vpop.f32.mrb[0].mxu0
    %v1585 = vadd.f32 %v1163, %v1584
    %1586 = vmatprep.mubr.bf16.mxu0 0
    %1587 = vmatmul.mubr.bf16.gmra.mrb[0].mxu0 %v1096
    %v1588 = vpop.f32.mrb[0].mxu0
    %v1589 = vadd.f32 %v1159, %v1588
    %v1590 = vpop.f32.mrb[0].mxu0
    %v1591 = vadd.f32 %v1163, %v1590
    %v1592 = vpop.f32.mrb[0].mxu0
    %v1593 = vadd.f32 %v1159, %v1592
    %v1594 = vpop.f32.mrb[0].mxu0
    %v1595 = vadd.f32 %v1163, %v1594
    %1596 = vmatprep.mubr.bf16.mxu0 0
    %1597 = vmatmul.mubr.bf16.gmra.mrb[0].mxu0 %v1097
    %v1598 = vpop.f32.mrb[0].mxu0
    %v1599 = vadd.f32 %v1159, %v1598
    %v1600 = vpop.f32.mrb[0].mxu0
    %v1601 = vadd.f32 %v1163, %v1600
    %v1602 = vpop.f32.mrb[0].mxu0
    %v1603 = vadd.f32 %v1159, %v1602
    %v1604 = vpop.f32.mrb[0].mxu0
    %v1605 = vadd.f32 %v1163, %v1604
    %1606 = vdwg.mxu0
    %1607 = vmatprep.subr.bf16.mxu0 0
    %1608 = vmatpush1.bf16.msra.mxu0 %v1305
    %1609 = vmatprep.subr.bf16.mxu0 0
    %1610 = vmatpush1.bf16.msra.mxu0 %v1310
    %1611 = vmatprep.subr.bf16.mxu0 0
    %1612 = vmatpush1.bf16.msra.mxu0 %v1315
    %1613 = vmatprep.subr.bf16.mxu0 0
    %1614 = vmatpush1.bf16.msra.mxu0 %v1320
    %1615 = vmatprep.subr.bf16.mxu0 0
    %1616 = vmatpush1.bf16.msra.mxu0 %v1325
    %1617 = vmatprep.subr.bf16.mxu0 0
    %1618 = vmatpush1.bf16.msra.mxu0 %v1330
    %1619 = vmatprep.subr.bf16.mxu0 0
    %1620 = vmatpush1.bf16.msra.mxu0 %v1335
    %1621 = vmatprep.subr.bf16.mxu0 0
    %1622 = vmatpush1.bf16.msra.mxu0 %v1340
    %1623 = vmatprep.subr.bf16.mxu0 0
    %1624 = vmatpush1.bf16.msra.mxu0 0
    %1625 = vmatprep.subr.bf16.mxu0 0
    %1626 = vmatpush1.bf16.msra.mxu0 0
    %1627 = vmatprep.subr.bf16.mxu0 0
    %1628 = vmatpush1.bf16.msra.mxu0 0
    %1629 = vmatprep.subr.bf16.mxu0 0
    %1630 = vmatpush1.bf16.msra.mxu0 0
    %1631 = vmatprep.subr.bf16.mxu0 0
    %1632 = vmatpush1.bf16.msra.mxu0 0
    %1633 = vmatprep.subr.bf16.mxu0 0
    %1634 = vmatpush1.bf16.msra.mxu0 0
    %1635 = vmatprep.subr.bf16.mxu0 0
    %1636 = vmatpush1.bf16.msra.mxu0 0
    %1637 = vmatprep.subr.bf16.mxu0 0
    %1638 = vmatpush1.bf16.msra.mxu0 0
    %1639 = vmatprep.mubr.bf16.mxu0 0
    %1640 = vmatmul.mubr.bf16.gmra.mrb[0].mxu0 %v1090
    %v1641 = vpop.f32.mrb[0].mxu0
    %v1642 = vadd.f32 %v1167, %v1641
    %v1643 = vpop.f32.mrb[0].mxu0
    %v1644 = vpop.f32.mrb[0].mxu0
    %v1645 = vadd.f32 %v1167, %v1644
    %v1646 = vpop.f32.mrb[0].mxu0
    %1647 = vmatprep.mubr.bf16.mxu0 0
    %1648 = vmatmul.mubr.bf16.gmra.mrb[0].mxu0 %v1091
    %v1649 = vpop.f32.mrb[0].mxu0
    %v1650 = vadd.f32 %v1167, %v1649
    %v1651 = vpop.f32.mrb[0].mxu0
    %v1652 = vpop.f32.mrb[0].mxu0
    %v1653 = vadd.f32 %v1167, %v1652
    %v1654 = vpop.f32.mrb[0].mxu0
    %1655 = vmatprep.mubr.bf16.mxu0 0
    %1656 = vmatmul.mubr.bf16.gmra.mrb[0].mxu0 %v1092
    %v1657 = vpop.f32.mrb[0].mxu0
    %v1658 = vadd.f32 %v1167, %v1657
    %v1659 = vpop.f32.mrb[0].mxu0
    %v1660 = vpop.f32.mrb[0].mxu0
    %v1661 = vadd.f32 %v1167, %v1660
    %v1662 = vpop.f32.mrb[0].mxu0
    %1663 = vmatprep.mubr.bf16.mxu0 0
    %1664 = vmatmul.mubr.bf16.gmra.mrb[0].mxu0 %v1093
    %v1665 = vpop.f32.mrb[0].mxu0
    %v1666 = vadd.f32 %v1167, %v1665
    %v1667 = vpop.f32.mrb[0].mxu0
    %v1668 = vpop.f32.mrb[0].mxu0
    %v1669 = vadd.f32 %v1167, %v1668
    %v1670 = vpop.f32.mrb[0].mxu0
    %1671 = vmatprep.mubr.bf16.mxu0 0
    %1672 = vmatmul.mubr.bf16.gmra.mrb[0].mxu0 %v1094
    %v1673 = vpop.f32.mrb[0].mxu0
    %v1674 = vadd.f32 %v1167, %v1673
    %v1675 = vpop.f32.mrb[0].mxu0
    %v1676 = vpop.f32.mrb[0].mxu0
    %v1677 = vadd.f32 %v1167, %v1676
    %v1678 = vpop.f32.mrb[0].mxu0
    %1679 = vmatprep.mubr.bf16.mxu0 0
    %1680 = vmatmul.mubr.bf16.gmra.mrb[0].mxu0 %v1095
    %v1681 = vpop.f32.mrb[0].mxu0
    %v1682 = vadd.f32 %v1167, %v1681
    %v1683 = vpop.f32.mrb[0].mxu0
    %v1684 = vpop.f32.mrb[0].mxu0
    %v1685 = vadd.f32 %v1167, %v1684
    %v1686 = vpop.f32.mrb[0].mxu0
    %1687 = vmatprep.mubr.bf16.mxu0 0
    %1688 = vmatmul.mubr.bf16.gmra.mrb[0].mxu0 %v1096
    %v1689 = vpop.f32.mrb[0].mxu0
    %v1690 = vadd.f32 %v1167, %v1689
    %v1691 = vpop.f32.mrb[0].mxu0
    %v1692 = vpop.f32.mrb[0].mxu0
    %v1693 = vadd.f32 %v1167, %v1692
    %v1694 = vpop.f32.mrb[0].mxu0
    %1695 = vmatprep.mubr.bf16.mxu0 0
    %1696 = vmatmul.mubr.bf16.gmra.mrb[0].mxu0 %v1097
    %v1697 = vpop.f32.mrb[0].mxu0
    %v1698 = vadd.f32 %v1167, %v1697
    %v1699 = vpop.f32.mrb[0].mxu0
    %v1700 = vpop.f32.mrb[0].mxu0
    %v1701 = vadd.f32 %v1167, %v1700
    %v1702 = vpop.f32.mrb[0].mxu0
    %1703 = vdwg.mxu0
    %1704 = vst [vmem:[#allocation8] sm:$0xff] %v1416
    %1705 = vst [vmem:[#allocation8 + $0x8] sm:$0xff] %v1418
    %1706 = vst [vmem:[#allocation8 + $0x10] sm:$0xff] %v1529
    %1707 = vst [vmem:[#allocation8 + $0x18] sm:$0xff] %v1531
    %1708 = vst [vmem:[#allocation8 + $0x20] sm:$0xff] %v1642
    %1709 = vst [vmem:[#allocation8 + $0x28] sm:$0xff] %v1420
    %1710 = vst [vmem:[#allocation8 + $0x30] sm:$0xff] %v1422
    %1711 = vst [vmem:[#allocation8 + $0x38] sm:$0xff] %v1533
    %1712 = vst [vmem:[#allocation8 + $0x40] sm:$0xff] %v1535
    %1713 = vst [vmem:[#allocation8 + $0x48] sm:$0xff] %v1645
    %1714 = vst [vmem:[#allocation8 + $0x50] sm:$0xff] %v1426
    %1715 = vst [vmem:[#allocation8 + $0x58] sm:$0xff] %v1428
    %1716 = vst [vmem:[#allocation8 + $0x60] sm:$0xff] %v1539
    %1717 = vst [vmem:[#allocation8 + $0x68] sm:$0xff] %v1541
    %1718 = vst [vmem:[#allocation8 + $0x70] sm:$0xff] %v1650
    %1719 = vst [vmem:[#allocation8 + $0x78] sm:$0xff] %v1430
    %1720 = vst [vmem:[#allocation8 + $0x80] sm:$0xff] %v1432
    %1721 = vst [vmem:[#allocation8 + $0x88] sm:$0xff] %v1543
    %1722 = vst [vmem:[#allocation8 + $0x90] sm:$0xff] %v1545
    %1723 = vst [vmem:[#allocation8 + $0x98] sm:$0xff] %v1653
    %1724 = vst [vmem:[#allocation8 + $0xa0] sm:$0xff] %v1436
    %1725 = vst [vmem:[#allocation8 + $0xa8] sm:$0xff] %v1438
    %1726 = vst [vmem:[#allocation8 + $0xb0] sm:$0xff] %v1549
    %1727 = vst [vmem:[#allocation8 + $0xb8] sm:$0xff] %v1551
    %1728 = vst [vmem:[#allocation8 + $0xc0] sm:$0xff] %v1658
    %1729 = vst [vmem:[#allocation8 + $0xc8] sm:$0xff] %v1440
    %1730 = vst [vmem:[#allocation8 + $0xd0] sm:$0xff] %v1442
    %1731 = vst [vmem:[#allocation8 + $0xd8] sm:$0xff] %v1553
    %1732 = vst [vmem:[#allocation8 + $0xe0] sm:$0xff] %v1555
    %1733 = vst [vmem:[#allocation8 + $0xe8] sm:$0xff] %v1661
    %1734 = vst [vmem:[#allocation8 + $0xf0] sm:$0xff] %v1446
    %1735 = vst [vmem:[#allocation8 + $0xf8] sm:$0xff] %v1448
    %1736 = vst [vmem:[#allocation8 + $0x100] sm:$0xff] %v1559
    %1737 = vst [vmem:[#allocation8 + $0x108] sm:$0xff] %v1561
    %1738 = vst [vmem:[#allocation8 + $0x110] sm:$0xff] %v1666
    %1739 = vst [vmem:[#allocation8 + $0x118] sm:$0xff] %v1450
    %1740 = vst [vmem:[#allocation8 + $0x120] sm:$0xff] %v1452
    %1741 = vst [vmem:[#allocation8 + $0x128] sm:$0xff] %v1563
    %1742 = vst [vmem:[#allocation8 + $0x130] sm:$0xff] %v1565
    %1743 = vst [vmem:[#allocation8 + $0x138] sm:$0xff] %v1669
    %1744 = vst [vmem:[#allocation8 + $0x140] sm:$0xff] %v1456
    %1745 = vst [vmem:[#allocation8 + $0x148] sm:$0xff] %v1458
    %1746 = vst [vmem:[#allocation8 + $0x150] sm:$0xff] %v1569
    %1747 = vst [vmem:[#allocation8 + $0x158] sm:$0xff] %v1571
    %1748 = vst [vmem:[#allocation8 + $0x160] sm:$0xff] %v1674
    %1749 = vst [vmem:[#allocation8 + $0x168] sm:$0xff] %v1460
    %1750 = vst [vmem:[#allocation8 + $0x170] sm:$0xff] %v1462
    %1751 = vst [vmem:[#allocation8 + $0x178] sm:$0xff] %v1573
    %1752 = vst [vmem:[#allocation8 + $0x180] sm:$0xff] %v1575
    %1753 = vst [vmem:[#allocation8 + $0x188] sm:$0xff] %v1677
    %1754 = vst [vmem:[#allocation8 + $0x190] sm:$0xff] %v1466
    %1755 = vst [vmem:[#allocation8 + $0x198] sm:$0xff] %v1468
    %1756 = vst [vmem:[#allocation8 + $0x1a0] sm:$0xff] %v1579
    %1757 = vst [vmem:[#allocation8 + $0x1a8] sm:$0xff] %v1581
    %1758 = vst [vmem:[#allocation8 + $0x1b0] sm:$0xff] %v1682
    %1759 = vst [vmem:[#allocation8 + $0x1b8] sm:$0xff] %v1470
    %1760 = vst [vmem:[#allocation8 + $0x1c0] sm:$0xff] %v1472
    %1761 = vst [vmem:[#allocation8 + $0x1c8] sm:$0xff] %v1583
    %1762 = vst [vmem:[#allocation8 + $0x1d0] sm:$0xff] %v1585
    %1763 = vst [vmem:[#allocation8 + $0x1d8] sm:$0xff] %v1685
    %1764 = vst [vmem:[#allocation8 + $0x1e0] sm:$0xff] %v1476
    %1765 = vst [vmem:[#allocation8 + $0x1e8] sm:$0xff] %v1478
    %1766 = vst [vmem:[#allocation8 + $0x1f0] sm:$0xff] %v1589
    %1767 = vst [vmem:[#allocation8 + $0x1f8] sm:$0xff] %v1591
    %1768 = vst [vmem:[#allocation8 + $0x200] sm:$0xff] %v1690
    %1769 = vst [vmem:[#allocation8 + $0x208] sm:$0xff] %v1480
    %1770 = vst [vmem:[#allocation8 + $0x210] sm:$0xff] %v1482
    %1771 = vst [vmem:[#allocation8 + $0x218] sm:$0xff] %v1593
    %1772 = vst [vmem:[#allocation8 + $0x220] sm:$0xff] %v1595
    %1773 = vst [vmem:[#allocation8 + $0x228] sm:$0xff] %v1693
    %1774 = vst [vmem:[#allocation8 + $0x230] sm:$0xff] %v1486
    %1775 = vst [vmem:[#allocation8 + $0x238] sm:$0xff] %v1488
    %1776 = vst [vmem:[#allocation8 + $0x240] sm:$0xff] %v1599
    %1777 = vst [vmem:[#allocation8 + $0x248] sm:$0xff] %v1601
    %1778 = vst [vmem:[#allocation8 + $0x250] sm:$0xff] %v1698
    %1779 = vst [vmem:[#allocation8 + $0x258] sm:$0xff] %v1490
    %1780 = vst [vmem:[#allocation8 + $0x260] sm:$0xff] %v1492
    %1781 = vst [vmem:[#allocation8 + $0x268] sm:$0xff] %v1603
    %1782 = vst [vmem:[#allocation8 + $0x270] sm:$0xff] %v1605
    %1783 = vst [vmem:[#allocation8 + $0x278] sm:$0xff] %v1701
    // Predicated region
    $region34: #{student_nn_forward.1} parent=1 // pred_check
      _
    $region35: #{student_nn_forward.1} parent=1 // pred_check_branch
      %1785 = sbr.rel (0) target = $region37
    $region36: #{student_nn_forward.1} parent=1 // pred_region
      %s1787 = ssub.s32 10240, 1280
      %1788 = vsyncadd [#allocation4], %s1787
      %s1789 = sshll.u32 [#allocation8], 4
      %s1790 = int_to_ptr.vmem [resolvable:$true] %s1789
      %1795 = dma.vmem_to_hbm [thread:$0]  %s1790, 1280, %s5, [#allocation4], 640, 640, 40
    $region37: #{student_nn_forward.1} parent=1 // pred_fallthru
      _
    // Predicated region
    $region38: #{student_nn_forward.1} parent=1 // pred_check
      _
    $region39: #{student_nn_forward.1} parent=1 // pred_check_branch
      %1797 = sbr.rel (0) target = $region41
    $region40: #{student_nn_forward.1} parent=1 // pred_region
      %1798 = dma.done [#allocation4], 10240
    $region41: #{student_nn_forward.1} parent=1 // pred_fallthru
      _
    %1799 = vsyncpa [#allocation3], 1
    %1800 = vsyncpa [#allocation6], 1
    %1801 = vsyncpa [#allocation4], 1

</llo_original>
